<compile_context>
chip_gen: v6e
topology: v6e:2x2x1
jax: 0.10.0
libtpu: 0.0.40
codegen_flags: <defaults>
</compile_context>

<pallas_src>
import functools
import math

import jax
import jax.numpy as jnp
from jax import lax
from jax.experimental import pallas as pl
from jax.experimental.pallas import tpu as pltpu

# ----------------------------- config ---------------------------------------
BATCH = 2
SEQ = 8
HIDDEN = 128        # analog of 768
GLYPH_DIM = 256     # analog of 1024
HEADS = 2
HEAD_DIM = HIDDEN // HEADS
FFN = 256           # analog of 3072
LAYERS = 2          # analog of 12
VOCAB = 64          # analog of 21128
TYPE_VOCAB = 2
MAX_POS = 32
LN_EPS = 1e-12

BS = BATCH * SEQ
VEC_W = 3 * HIDDEN          # packed per-layer vector width (>= FFN, >= H)
assert FFN <= VEC_W and HIDDEN <= VEC_W

# Rows of the packed per-layer vector array (LAYERS, 8, VEC_W).
ROW_BQKV, ROW_BO, ROW_B1, ROW_B2, ROW_LN1G, ROW_LN1B, ROW_LN2G, ROW_LN2B = range(8)


# ----------------------------- in-kernel helpers (f32 VPU math) -------------
def _layer_norm(x, gamma, beta, eps):
    mu = jnp.mean(x, axis=-1, keepdims=True)
    var = jnp.mean((x - mu) * (x - mu), axis=-1, keepdims=True)
    return (x - mu) * lax.rsqrt(var + eps) * gamma + beta


def _gelu(y):
    # TODO(synk): PyTorch nn.GELU / BERT "gelu" is erf-based; tanh approximation
    # kept for a guaranteed TPU EUP lowering (|error| ~1e-3).
    return 0.5 * y * (1.0 + jnp.tanh(0.7978845608028654 * (y + 0.044715 * y * y * y)))


# ----------------------------- fused forward kernel --------------------------
def glyph_forward_kernel(ids_ref, pos_ids_ref, tt_ref,
                         word_ref, pos_ref, tok_ref, glyph_ref, ew_ref, evec_ref,
                         wqkv_ref, wo_ref, w1_ref, w2_ref, lvec_ref,
                         o_ref, x_scr, *, batch, seq, heads, head_dim, eps):
    """Grid axis = encoder layer. x_scr (B*S, H) stays VMEM-resident throughout."""
    l = pl.program_id(0)
    H = x_scr.shape[-1]
    n_tok = batch * seq
    scale = 1.0 / math.sqrt(head_dim)

    # ---------------- embedding path (grid step 0 only) ----------------------
    @pl.when(l == 0)
    def _():
        ids = ids_ref[...]                                   # (BS, 1) i32
        pos_ids = pos_ids_ref[...]                           # (BS, 1) i32
        tt = tt_ref[...]                                     # (BS, 1) i32
        vocab = word_ref.shape[0]
        max_pos = pos_ref.shape[0]

        # One-hot gathers on the MXU (exact row selection in f32).
        onehot_w = (lax.broadcasted_iota(jnp.int32, (n_tok, vocab), 1)
                    == ids).astype(jnp.float32)              # (BS, VOCAB)
        onehot_p = (lax.broadcasted_iota(jnp.int32, (n_tok, max_pos), 1)
                    == pos_ids).astype(jnp.float32)          # (BS, MAX_POS)

        we = jnp.dot(onehot_w, word_ref[...], preferred_element_type=jnp.float32)
        pe = jnp.dot(onehot_p, pos_ref[...], preferred_element_type=jnp.float32)
        te = jnp.where(tt == 0, tok_ref[0:1, :], tok_ref[1:2, :])   # TYPE_VOCAB==2

        emb = _layer_norm(we + pe + te,
                          evec_ref[0:1, :], evec_ref[1:2, :], eps)

        glyph = jnp.dot(onehot_w, glyph_ref[...],
                        preferred_element_type=jnp.float32)          # (BS, G)
        proj = jnp.dot(glyph.astype(jnp.bfloat16), ew_ref[...],
                       preferred_element_type=jnp.float32) + evec_ref[2:3, :]
        x_scr[...] = emb + proj

    # ---------------- encoder layer `l` ---------------------------------------
    x = x_scr[...]                                            # (BS, H) f32
    vecs = lvec_ref[0]                                        # (8, VEC_W) f32
    bqkv = vecs[ROW_BQKV:ROW_BQKV + 1, :3 * H]
    bo = vecs[ROW_BO:ROW_BO + 1, :H]
    b1 = vecs[ROW_B1:ROW_B1 + 1, :w1_ref.shape[-1]]
    b2 = vecs[ROW_B2:ROW_B2 + 1, :H]
    ln1_g = vecs[ROW_LN1G:ROW_LN1G + 1, :H]
    ln1_b = vecs[ROW_LN1B:ROW_LN1B + 1, :H]
    ln2_g = vecs[ROW_LN2G:ROW_LN2G + 1, :H]
    ln2_b = vecs[ROW_LN2B:ROW_LN2B + 1, :H]

    # Fused Q|K|V projection: (BS,H)@(H,3H), bf16 operands, f32 accumulation.
    qkv = jnp.dot(x.astype(jnp.bfloat16), wqkv_ref[0],
                  preferred_element_type=jnp.float32) + bqkv         # (BS, 3H)

    # Attention per batch (batch folded into rows), per head; per-head contexts
    # are concatenated into a lane-dense (S, H=128) buffer so the output
    # projection is one K=128 MXU matmul.
    ctx_rows = []
    for b in range(batch):
        r = b * seq
        ctx_heads = []
        for h in range(heads):
            lo = h * head_dim
            q = qkv[r:r + seq, lo:lo + head_dim].astype(jnp.bfloat16)
            k = qkv[r:r + seq, H + lo:H + lo + head_dim].astype(jnp.bfloat16)
            v = qkv[r:r + seq, 2 * H + lo:2 * H + lo + head_dim].astype(jnp.bfloat16)
            s = lax.dot_general(q, k, (((1,), (1,)), ((), ())),
                                preferred_element_type=jnp.float32) * scale
            p = jnp.exp(s - jnp.max(s, axis=-1, keepdims=True))      # f32 softmax
            p = p * pl.reciprocal(jnp.sum(p, axis=-1, keepdims=True), approx=True)
            ctx_heads.append(jnp.dot(p.astype(jnp.bfloat16), v,
                                     preferred_element_type=jnp.float32))
        ctx_rows.append(jnp.concatenate(ctx_heads, axis=-1))          # (S, H)
    ctx = jnp.concatenate(ctx_rows, axis=0)                           # (BS, H)
    attn = jnp.dot(ctx.astype(jnp.bfloat16), wo_ref[0],
                   preferred_element_type=jnp.float32) + bo

    # residual + LayerNorm 1
    h1 = _layer_norm(x + attn, ln1_g, ln1_b, eps)

    # FFN: (BS,H)@(H,F) gelu (BS,F)@(F,H)
    f = jnp.dot(h1.astype(jnp.bfloat16), w1_ref[0],
                preferred_element_type=jnp.float32) + b1
    f = _gelu(f)
    f = jnp.dot(f.astype(jnp.bfloat16), w2_ref[0],
                preferred_element_type=jnp.float32) + b2

    # residual + LayerNorm 2
    h2 = _layer_norm(h1 + f, ln2_g, ln2_b, eps)
    x_scr[...] = h2
    o_ref[...] = h2.astype(o_ref.dtype)   # constant out index -> one HBM writeback


# ----------------------------- wrapper ---------------------------------------
@jax.jit
def glyph_model_forward(params, input_ids, token_type_ids, attention_mask):
    B, S = input_ids.shape
    H = HIDDEN
    n_tok = B * S

    ids = input_ids.reshape(n_tok, 1).astype(jnp.int32)
    # TODO(synk): the reference forwards attention_mask into BertEmbeddings'
    # position_ids slot (3rd positional arg) and runs the encoder unmasked; we
    # reproduce that quirk (position ids == attention-mask values).
    pos_ids = attention_mask.reshape(n_tok, 1).astype(jnp.int32)
    tt = token_type_ids.reshape(n_tok, 1).astype(jnp.int32)

    const = lambda l: (0, 0)          # grid-invariant inputs: fetched once
    per_layer = lambda l: (l, 0, 0)   # layer-streamed stacked weights

    out = pl.pallas_call(
        functools.partial(glyph_forward_kernel, batch=B, seq=S, heads=HEADS,
                          head_dim=HEAD_DIM, eps=LN_EPS),
        out_shape=jax.ShapeDtypeStruct((n_tok, H), jnp.float32),
        grid=(LAYERS,),
        in_specs=[
            pl.BlockSpec((n_tok, 1), const),                 # input ids
            pl.BlockSpec((n_tok, 1), const),                 # position ids (== mask)
            pl.BlockSpec((n_tok, 1), const),                 # token-type ids
            pl.BlockSpec((VOCAB, H), const),                 # word-emb table
            pl.BlockSpec((MAX_POS, H), const),               # pos-emb table
            pl.BlockSpec((TYPE_VOCAB, H), const),            # token-type table
            pl.BlockSpec((VOCAB, GLYPH_DIM), const),         # glyph-emb table
            pl.BlockSpec((GLYPH_DIM, H), const),             # e_w (bf16)
            pl.BlockSpec((3, H), const),                     # [emb_ln_g|emb_ln_b|e_b]
            pl.BlockSpec((1, H, 3 * H), per_layer),          # stacked wqkv (bf16)
            pl.BlockSpec((1, H, H), per_layer),              # stacked wo   (bf16)
            pl.BlockSpec((1, H, FFN), per_layer),            # stacked w1   (bf16)
            pl.BlockSpec((1, FFN, H), per_layer),            # stacked w2   (bf16)
            pl.BlockSpec((1, 8, VEC_W), per_layer),          # packed bias/LN vecs
        ],
        out_specs=pl.BlockSpec((n_tok, H), const),
        scratch_shapes=[pltpu.VMEM((n_tok, H), jnp.float32)],
        compiler_params=pltpu.CompilerParams(dimension_semantics=("arbitrary",)),
    )(ids, pos_ids, tt,
      params["word_emb"], params["pos_emb"], params["tok_emb"], params["glyph_emb"],
      params["e_w"], params["emb_vecs"],
      params["wqkv"], params["wo"], params["w1"], params["w2"], params["layer_vecs"])
    return out.reshape(B, S, H)


# ----------------------------- params ----------------------------------------
def init_params(key):
    def nrm(k, shape, dtype=jnp.float32):
        return (0.02 * jax.random.normal(k, shape, jnp.float32)).astype(dtype)

    keys = jax.random.split(key, 5 + LAYERS)
    params = {
        "word_emb": nrm(keys[0], (VOCAB, HIDDEN)),
        "pos_emb": nrm(keys[1], (MAX_POS, HIDDEN)),
        "tok_emb": nrm(keys[2], (TYPE_VOCAB, HIDDEN)),
        # TODO(synk): original loads a pretrained font embedding from a .emb file;
        # replaced with deterministic synthetic weights.
        "glyph_emb": nrm(keys[3], (VOCAB, GLYPH_DIM)),
        "e_w": nrm(keys[4], (GLYPH_DIM, HIDDEN), jnp.bfloat16),     # nn.Linear(1024,768)
        "emb_vecs": jnp.stack([jnp.ones((HIDDEN,), jnp.float32),    # emb LN gamma
                               jnp.zeros((HIDDEN,), jnp.float32),   # emb LN beta
                               jnp.zeros((HIDDEN,), jnp.float32)]), # e bias
    }
    wqkv, wo, w1, w2, lvecs = [], [], [], [], []
    for li in range(LAYERS):
        lk = jax.random.split(keys[5 + li], 8)          # fixed: no key reuse
        wqkv.append(nrm(lk[0], (HIDDEN, 3 * HIDDEN), jnp.bfloat16))
        wo.append(nrm(lk[1], (HIDDEN, HIDDEN), jnp.bfloat16))
        w1.append(nrm(lk[2], (HIDDEN, FFN), jnp.bfloat16))
        w2.append(nrm(lk[3], (FFN, HIDDEN), jnp.bfloat16))
        v = jnp.zeros((8, VEC_W), jnp.float32)
        v = v.at[ROW_BQKV, :3 * HIDDEN].set(nrm(lk[4], (3 * HIDDEN,)))
        v = v.at[ROW_BO, :HIDDEN].set(nrm(lk[5], (HIDDEN,)))
        v = v.at[ROW_B1, :FFN].set(nrm(lk[6], (FFN,)))
        v = v.at[ROW_B2, :HIDDEN].set(nrm(lk[7], (HIDDEN,)))
        v = v.at[ROW_LN1G, :HIDDEN].set(1.0)
        v = v.at[ROW_LN2G, :HIDDEN].set(1.0)
        lvecs.append(v)
    params["wqkv"] = jnp.stack(wqkv)
    params["wo"] = jnp.stack(wo)
    params["w1"] = jnp.stack(w1)
    params["w2"] = jnp.stack(w2)
    params["layer_vecs"] = jnp.stack(lvecs)
    return params


# ----------------------------- main -------------------------------------------
if __name__ == "__main__":
    root = jax.random.PRNGKey(0)
    k_params, k_ids = jax.random.split(root)
    params = init_params(k_params)

    input_ids = jax.random.randint(k_ids, (BATCH, SEQ), 0, VOCAB, dtype=jnp.int32)
    token_type_ids = jnp.zeros((BATCH, SEQ), jnp.int32)
    attention_mask = jnp.ones((BATCH, SEQ), jnp.float32)

    out = glyph_model_forward(params, input_ids, token_type_ids, attention_mask)
    jax.block_until_ready(out)
    assert out.shape == (BATCH, SEQ, HIDDEN)
    assert bool(jnp.all(jnp.isfinite(out)))
    print("KERNEL_OK")
</pallas_src>

<mosaic_0001>
module attributes {stable_mosaic.version = 11 : i64} {
  func.func @glyph_forward_kernel(%arg0: i32, %arg1: memref<16x1xi32, #tpu.memory_space<vmem>>, %arg2: memref<16x1xi32, #tpu.memory_space<vmem>>, %arg3: memref<16x1xi32, #tpu.memory_space<vmem>>, %arg4: memref<64x128xf32, #tpu.memory_space<vmem>>, %arg5: memref<32x128xf32, #tpu.memory_space<vmem>>, %arg6: memref<2x128xf32, #tpu.memory_space<vmem>>, %arg7: memref<64x256xf32, #tpu.memory_space<vmem>>, %arg8: memref<256x128xbf16, #tpu.memory_space<vmem>>, %arg9: memref<3x128xf32, #tpu.memory_space<vmem>>, %arg10: memref<1x128x384xbf16, #tpu.memory_space<vmem>>, %arg11: memref<1x128x128xbf16, #tpu.memory_space<vmem>>, %arg12: memref<1x128x256xbf16, #tpu.memory_space<vmem>>, %arg13: memref<1x256x128xbf16, #tpu.memory_space<vmem>>, %arg14: memref<1x8x384xf32, #tpu.memory_space<vmem>>, %arg15: memref<16x128xf32, #tpu.memory_space<vmem>>, %arg16: memref<16x128xf32, #tpu.memory_space<vmem>>) attributes {dimension_semantics = [#tpu.dimension_semantics<arbitrary>], iteration_bounds = array<i64: 2>, scalar_prefetch = 0 : i64, scratch_operands = 1 : i64, tpu.core_type = #tpu.core_type<tc>, window_params = [{pipeline_mode = #tpu.pipeline_mode<synchronous>, transform_indices = @transform_0, window_bounds = array<i64: 16, 1>}, {pipeline_mode = #tpu.pipeline_mode<synchronous>, transform_indices = @transform_1, window_bounds = array<i64: 16, 1>}, {pipeline_mode = #tpu.pipeline_mode<synchronous>, transform_indices = @transform_2, window_bounds = array<i64: 16, 1>}, {pipeline_mode = #tpu.pipeline_mode<synchronous>, transform_indices = @transform_3, window_bounds = array<i64: 64, 128>}, {pipeline_mode = #tpu.pipeline_mode<synchronous>, transform_indices = @transform_4, window_bounds = array<i64: 32, 128>}, {pipeline_mode = #tpu.pipeline_mode<synchronous>, transform_indices = @transform_5, window_bounds = array<i64: 2, 128>}, {pipeline_mode = #tpu.pipeline_mode<synchronous>, transform_indices = @transform_6, window_bounds = array<i64: 64, 256>}, {pipeline_mode = #tpu.pipeline_mode<synchronous>, transform_indices = @transform_7, window_bounds = array<i64: 256, 128>}, {pipeline_mode = #tpu.pipeline_mode<synchronous>, transform_indices = @transform_8, window_bounds = array<i64: 3, 128>}, {transform_indices = @transform_9, window_bounds = array<i64: 1, 128, 384>}, {transform_indices = @transform_10, window_bounds = array<i64: 1, 128, 128>}, {transform_indices = @transform_11, window_bounds = array<i64: 1, 128, 256>}, {transform_indices = @transform_12, window_bounds = array<i64: 1, 256, 128>}, {transform_indices = @transform_13, window_bounds = array<i64: 1, 8, 384>}, {pipeline_mode = #tpu.pipeline_mode<synchronous>, transform_indices = @transform_14, window_bounds = array<i64: 16, 128>}]} {
    %c0_i32 = arith.constant 0 : i32
    %0 = arith.cmpi eq, %arg0, %c0_i32 : i32
    %1 = arith.extui %0 : i1 to i32
    %c0_i32_0 = arith.constant 0 : i32
    %2 = arith.cmpi ne, %1, %c0_i32_0 : i32
    scf.if %2 {
      %c0_58 = arith.constant 0 : index
      %c0_59 = arith.constant 0 : index
      %190 = vector.load %arg1[%c0_58, %c0_59] : memref<16x1xi32, #tpu.memory_space<vmem>>, vector<16x1xi32>
      %c0_60 = arith.constant 0 : index
      %c0_61 = arith.constant 0 : index
      %191 = vector.load %arg2[%c0_60, %c0_61] : memref<16x1xi32, #tpu.memory_space<vmem>>, vector<16x1xi32>
      %c0_62 = arith.constant 0 : index
      %c0_63 = arith.constant 0 : index
      %192 = vector.load %arg3[%c0_62, %c0_63] : memref<16x1xi32, #tpu.memory_space<vmem>>, vector<16x1xi32>
      %193 = tpu.iota {dimensions = array<i32: 1>} : vector<16x64xi32>
      %194 = vector.broadcast %190 : vector<16x1xi32> to vector<16x64xi32>
      %195 = arith.cmpi eq, %193, %194 : vector<16x64xi32>
      %196 = arith.extui %195 : vector<16x64xi1> to vector<16x64xi32>
      %197 = arith.sitofp %196 : vector<16x64xi32> to vector<16x64xf32>
      %198 = tpu.iota {dimensions = array<i32: 1>} : vector<16x32xi32>
      %199 = vector.broadcast %191 : vector<16x1xi32> to vector<16x32xi32>
      %200 = arith.cmpi eq, %198, %199 : vector<16x32xi32>
      %201 = arith.extui %200 : vector<16x32xi1> to vector<16x32xi32>
      %202 = arith.sitofp %201 : vector<16x32xi32> to vector<16x32xf32>
      %c0_64 = arith.constant 0 : index
      %c0_65 = arith.constant 0 : index
      %203 = vector.load %arg4[%c0_64, %c0_65] : memref<64x128xf32, #tpu.memory_space<vmem>>, vector<64x128xf32>
      %cst_66 = arith.constant dense<0.000000e+00> : vector<16x128xf32>
      %204 = tpu.matmul %197, %203, %cst_66 {dimension_numbers = #tpu.dot_dimension_numbers<[1], [0], [0], [1], [0, 0, 1, 1], [], []>} : vector<16x64xf32>, vector<64x128xf32>, vector<16x128xf32> -> vector<16x128xf32>
      %c0_67 = arith.constant 0 : index
      %c0_68 = arith.constant 0 : index
      %205 = vector.load %arg5[%c0_67, %c0_68] : memref<32x128xf32, #tpu.memory_space<vmem>>, vector<32x128xf32>
      %cst_69 = arith.constant dense<0.000000e+00> : vector<16x128xf32>
      %206 = tpu.matmul %202, %205, %cst_69 {dimension_numbers = #tpu.dot_dimension_numbers<[1], [0], [0], [1], [0, 0, 1, 1], [], []>} : vector<16x32xf32>, vector<32x128xf32>, vector<16x128xf32> -> vector<16x128xf32>
      %c0_i32_70 = arith.constant 0 : i32
      %207 = vector.broadcast %c0_i32_70 : i32 to vector<16x1xi32>
      %208 = arith.cmpi eq, %192, %207 : vector<16x1xi32>
      %c0_71 = arith.constant 0 : index
      %c0_72 = arith.constant 0 : index
      %209 = vector.load %arg6[%c0_71, %c0_72] : memref<2x128xf32, #tpu.memory_space<vmem>>, vector<1x128xf32>
      %c1 = arith.constant 1 : index
      %c0_73 = arith.constant 0 : index
      %210 = vector.load %arg6[%c1, %c0_73] : memref<2x128xf32, #tpu.memory_space<vmem>>, vector<1x128xf32>
      %211 = vector.shape_cast %208 : vector<16x1xi1> to vector<16x1xi1>
      %212 = vector.broadcast %211 : vector<16x1xi1> to vector<16x128xi1>
      %213 = vector.shape_cast %209 : vector<1x128xf32> to vector<1x128xf32>
      %214 = vector.broadcast %213 : vector<1x128xf32> to vector<16x128xf32>
      %215 = vector.shape_cast %210 : vector<1x128xf32> to vector<1x128xf32>
      %216 = vector.broadcast %215 : vector<1x128xf32> to vector<16x128xf32>
      %217 = arith.select %212, %214, %216 : vector<16x128xi1>, vector<16x128xf32>
      %218 = arith.addf %204, %206 : vector<16x128xf32>
      %219 = arith.addf %218, %217 : vector<16x128xf32>
      %c0_74 = arith.constant 0 : index
      %c0_75 = arith.constant 0 : index
      %220 = vector.load %arg9[%c0_74, %c0_75] : memref<3x128xf32, #tpu.memory_space<vmem>>, vector<1x128xf32>
      %c1_76 = arith.constant 1 : index
      %c0_77 = arith.constant 0 : index
      %221 = vector.load %arg9[%c1_76, %c0_77] : memref<3x128xf32, #tpu.memory_space<vmem>>, vector<1x128xf32>
      %cst_78 = arith.constant dense<0.000000e+00> : vector<16xf32>
      %222 = vector.multi_reduction <add>, %219, %cst_78 [1] : vector<16x128xf32> to vector<16xf32>
      %223 = vector.shape_cast %222 : vector<16xf32> to vector<16x1xf32>
      %cst_79 = arith.constant 1.280000e+02 : f32
      %224 = vector.broadcast %cst_79 : f32 to vector<16x1xf32>
      %225 = arith.divf %223, %224 : vector<16x1xf32>
      %226 = vector.broadcast %225 : vector<16x1xf32> to vector<16x128xf32>
      %227 = arith.subf %219, %226 : vector<16x128xf32>
      %228 = vector.broadcast %225 : vector<16x1xf32> to vector<16x128xf32>
      %229 = arith.subf %219, %228 : vector<16x128xf32>
      %230 = arith.mulf %227, %229 : vector<16x128xf32>
      %cst_80 = arith.constant dense<0.000000e+00> : vector<16xf32>
      %231 = vector.multi_reduction <add>, %230, %cst_80 [1] : vector<16x128xf32> to vector<16xf32>
      %232 = vector.shape_cast %231 : vector<16xf32> to vector<16x1xf32>
      %cst_81 = arith.constant 1.280000e+02 : f32
      %233 = vector.broadcast %cst_81 : f32 to vector<16x1xf32>
      %234 = arith.divf %232, %233 : vector<16x1xf32>
      %235 = vector.broadcast %225 : vector<16x1xf32> to vector<16x128xf32>
      %236 = arith.subf %219, %235 : vector<16x128xf32>
      %cst_82 = arith.constant 9.99999996E-13 : f32
      %237 = vector.broadcast %cst_82 : f32 to vector<16x1xf32>
      %238 = arith.addf %234, %237 : vector<16x1xf32>
      %239 = math.rsqrt %238 : vector<16x1xf32>
      %240 = vector.broadcast %239 : vector<16x1xf32> to vector<16x128xf32>
      %241 = arith.mulf %236, %240 : vector<16x128xf32>
      %242 = vector.broadcast %220 : vector<1x128xf32> to vector<16x128xf32>
      %243 = arith.mulf %241, %242 : vector<16x128xf32>
      %244 = vector.broadcast %221 : vector<1x128xf32> to vector<16x128xf32>
      %245 = arith.addf %243, %244 : vector<16x128xf32>
      %c0_83 = arith.constant 0 : index
      %c0_84 = arith.constant 0 : index
      %246 = vector.load %arg7[%c0_83, %c0_84] : memref<64x256xf32, #tpu.memory_space<vmem>>, vector<64x256xf32>
      %cst_85 = arith.constant dense<0.000000e+00> : vector<16x256xf32>
      %247 = tpu.matmul %197, %246, %cst_85 {dimension_numbers = #tpu.dot_dimension_numbers<[1], [0], [0], [1], [0, 0, 1, 1], [], []>} : vector<16x64xf32>, vector<64x256xf32>, vector<16x256xf32> -> vector<16x256xf32>
      %248 = arith.truncf %247 : vector<16x256xf32> to vector<16x256xbf16>
      %c0_86 = arith.constant 0 : index
      %c0_87 = arith.constant 0 : index
      %249 = vector.load %arg8[%c0_86, %c0_87] : memref<256x128xbf16, #tpu.memory_space<vmem>>, vector<256x128xbf16>
      %cst_88 = arith.constant dense<0.000000e+00> : vector<16x128xf32>
      %250 = tpu.matmul %248, %249, %cst_88 {dimension_numbers = #tpu.dot_dimension_numbers<[1], [0], [0], [1], [0, 0, 1, 1], [], []>} : vector<16x256xbf16>, vector<256x128xbf16>, vector<16x128xf32> -> vector<16x128xf32>
      %c2 = arith.constant 2 : index
      %c0_89 = arith.constant 0 : index
      %251 = vector.load %arg9[%c2, %c0_89] : memref<3x128xf32, #tpu.memory_space<vmem>>, vector<1x128xf32>
      %252 = vector.broadcast %251 : vector<1x128xf32> to vector<16x128xf32>
      %253 = arith.addf %250, %252 : vector<16x128xf32>
      %254 = arith.addf %245, %253 : vector<16x128xf32>
      %c0_90 = arith.constant 0 : index
      %c0_91 = arith.constant 0 : index
      %255 = vector.load %arg16[%c0_90, %c0_91] : memref<16x128xf32, #tpu.memory_space<vmem>>, vector<16x128xf32>
      tpu.vector_store %arg16[%c0_90, %c0_91], %254 {strides = array<i32>} : memref<16x128xf32, #tpu.memory_space<vmem>>, vector<16x128xf32>,
    } else {
    }
    %c0 = arith.constant 0 : index
    %c0_1 = arith.constant 0 : index
    %3 = vector.load %arg16[%c0, %c0_1] : memref<16x128xf32, #tpu.memory_space<vmem>>, vector<16x128xf32>
    %c0_2 = arith.constant 0 : index
    %c0_3 = arith.constant 0 : index
    %c0_4 = arith.constant 0 : index
    %4 = vector.load %arg14[%c0_2, %c0_3, %c0_4] : memref<1x8x384xf32, #tpu.memory_space<vmem>>, vector<1x8x384xf32>
    %5 = vector.shape_cast %4 : vector<1x8x384xf32> to vector<8x384xf32>
    %6 = vector.extract_strided_slice %5 {offsets = [0, 0], sizes = [1, 384], strides = [1, 1]} : vector<8x384xf32> to vector<1x384xf32>
    %7 = vector.extract_strided_slice %5 {offsets = [1, 0], sizes = [1, 128], strides = [1, 1]} : vector<8x384xf32> to vector<1x128xf32>
    %8 = vector.extract_strided_slice %5 {offsets = [2, 0], sizes = [1, 256], strides = [1, 1]} : vector<8x384xf32> to vector<1x256xf32>
    %9 = vector.extract_strided_slice %5 {offsets = [3, 0], sizes = [1, 128], strides = [1, 1]} : vector<8x384xf32> to vector<1x128xf32>
    %10 = vector.extract_strided_slice %5 {offsets = [4, 0], sizes = [1, 128], strides = [1, 1]} : vector<8x384xf32> to vector<1x128xf32>
    %11 = vector.extract_strided_slice %5 {offsets = [5, 0], sizes = [1, 128], strides = [1, 1]} : vector<8x384xf32> to vector<1x128xf32>
    %12 = vector.extract_strided_slice %5 {offsets = [6, 0], sizes = [1, 128], strides = [1, 1]} : vector<8x384xf32> to vector<1x128xf32>
    %13 = vector.extract_strided_slice %5 {offsets = [7, 0], sizes = [1, 128], strides = [1, 1]} : vector<8x384xf32> to vector<1x128xf32>
    %14 = arith.truncf %3 : vector<16x128xf32> to vector<16x128xbf16>
    %c0_5 = arith.constant 0 : index
    %c0_6 = arith.constant 0 : index
    %c0_7 = arith.constant 0 : index
    %15 = vector.load %arg10[%c0_5, %c0_6, %c0_7] : memref<1x128x384xbf16, #tpu.memory_space<vmem>>, vector<1x128x384xbf16>
    %16 = vector.shape_cast %15 : vector<1x128x384xbf16> to vector<128x384xbf16>
    %cst = arith.constant dense<0.000000e+00> : vector<16x384xf32>
    %17 = tpu.matmul %14, %16, %cst {dimension_numbers = #tpu.dot_dimension_numbers<[1], [0], [0], [1], [0, 0, 1, 1], [], []>} : vector<16x128xbf16>, vector<128x384xbf16>, vector<16x384xf32> -> vector<16x384xf32>
    %18 = vector.broadcast %6 : vector<1x384xf32> to vector<16x384xf32>
    %19 = arith.addf %17, %18 : vector<16x384xf32>
    %20 = vector.extract_strided_slice %19 {offsets = [0, 0], sizes = [8, 64], strides = [1, 1]} : vector<16x384xf32> to vector<8x64xf32>
    %21 = arith.truncf %20 : vector<8x64xf32> to vector<8x64xbf16>
    %22 = vector.extract_strided_slice %19 {offsets = [0, 128], sizes = [8, 64], strides = [1, 1]} : vector<16x384xf32> to vector<8x64xf32>
    %23 = arith.truncf %22 : vector<8x64xf32> to vector<8x64xbf16>
    %24 = vector.extract_strided_slice %19 {offsets = [0, 256], sizes = [8, 64], strides = [1, 1]} : vector<16x384xf32> to vector<8x64xf32>
    %25 = arith.truncf %24 : vector<8x64xf32> to vector<8x64xbf16>
    %cst_8 = arith.constant dense<0.000000e+00> : vector<8x8xf32>
    %26 = tpu.matmul %21, %23, %cst_8 {dimension_numbers = #tpu.dot_dimension_numbers<[1], [1], [0], [0], [0, 0, 1, 0], [], []>} : vector<8x64xbf16>, vector<8x64xbf16>, vector<8x8xf32> -> vector<8x8xf32>
    %cst_9 = arith.constant 1.250000e-01 : f32
    %27 = vector.broadcast %cst_9 : f32 to vector<8x8xf32>
    %28 = arith.mulf %26, %27 : vector<8x8xf32>
    %cst_10 = arith.constant dense<0xFF800000> : vector<8xf32>
    %29 = vector.multi_reduction <maximumf>, %28, %cst_10 [1] : vector<8x8xf32> to vector<8xf32>
    %30 = vector.shape_cast %29 : vector<8xf32> to vector<8x1xf32>
    %31 = vector.broadcast %30 : vector<8x1xf32> to vector<8x8xf32>
    %32 = arith.subf %28, %31 : vector<8x8xf32>
    %33 = math.exp %32 : vector<8x8xf32>
    %cst_11 = arith.constant dense<0.000000e+00> : vector<8xf32>
    %34 = vector.multi_reduction <add>, %33, %cst_11 [1] : vector<8x8xf32> to vector<8xf32>
    %35 = vector.shape_cast %34 : vector<8xf32> to vector<8x1xf32>
    %36 = tpu.reciprocal %35 {approx = true} : vector<8x1xf32> -> vector<8x1xf32>
    %37 = vector.broadcast %36 : vector<8x1xf32> to vector<8x8xf32>
    %38 = arith.mulf %33, %37 : vector<8x8xf32>
    %39 = arith.truncf %38 : vector<8x8xf32> to vector<8x8xbf16>
    %cst_12 = arith.constant dense<0.000000e+00> : vector<8x64xf32>
    %40 = tpu.matmul %39, %25, %cst_12 {dimension_numbers = #tpu.dot_dimension_numbers<[1], [0], [0], [1], [0, 0, 1, 1], [], []>} : vector<8x8xbf16>, vector<8x64xbf16>, vector<8x64xf32> -> vector<8x64xf32>
    %41 = vector.extract_strided_slice %19 {offsets = [0, 64], sizes = [8, 64], strides = [1, 1]} : vector<16x384xf32> to vector<8x64xf32>
    %42 = arith.truncf %41 : vector<8x64xf32> to vector<8x64xbf16>
    %43 = vector.extract_strided_slice %19 {offsets = [0, 192], sizes = [8, 64], strides = [1, 1]} : vector<16x384xf32> to vector<8x64xf32>
    %44 = arith.truncf %43 : vector<8x64xf32> to vector<8x64xbf16>
    %45 = vector.extract_strided_slice %19 {offsets = [0, 320], sizes = [8, 64], strides = [1, 1]} : vector<16x384xf32> to vector<8x64xf32>
    %46 = arith.truncf %45 : vector<8x64xf32> to vector<8x64xbf16>
    %cst_13 = arith.constant dense<0.000000e+00> : vector<8x8xf32>
    %47 = tpu.matmul %42, %44, %cst_13 {dimension_numbers = #tpu.dot_dimension_numbers<[1], [1], [0], [0], [0, 0, 1, 0], [], []>} : vector<8x64xbf16>, vector<8x64xbf16>, vector<8x8xf32> -> vector<8x8xf32>
    %cst_14 = arith.constant 1.250000e-01 : f32
    %48 = vector.broadcast %cst_14 : f32 to vector<8x8xf32>
    %49 = arith.mulf %47, %48 : vector<8x8xf32>
    %cst_15 = arith.constant dense<0xFF800000> : vector<8xf32>
    %50 = vector.multi_reduction <maximumf>, %49, %cst_15 [1] : vector<8x8xf32> to vector<8xf32>
    %51 = vector.shape_cast %50 : vector<8xf32> to vector<8x1xf32>
    %52 = vector.broadcast %51 : vector<8x1xf32> to vector<8x8xf32>
    %53 = arith.subf %49, %52 : vector<8x8xf32>
    %54 = math.exp %53 : vector<8x8xf32>
    %cst_16 = arith.constant dense<0.000000e+00> : vector<8xf32>
    %55 = vector.multi_reduction <add>, %54, %cst_16 [1] : vector<8x8xf32> to vector<8xf32>
    %56 = vector.shape_cast %55 : vector<8xf32> to vector<8x1xf32>
    %57 = tpu.reciprocal %56 {approx = true} : vector<8x1xf32> -> vector<8x1xf32>
    %58 = vector.broadcast %57 : vector<8x1xf32> to vector<8x8xf32>
    %59 = arith.mulf %54, %58 : vector<8x8xf32>
    %60 = arith.truncf %59 : vector<8x8xf32> to vector<8x8xbf16>
    %cst_17 = arith.constant dense<0.000000e+00> : vector<8x64xf32>
    %61 = tpu.matmul %60, %46, %cst_17 {dimension_numbers = #tpu.dot_dimension_numbers<[1], [0], [0], [1], [0, 0, 1, 1], [], []>} : vector<8x8xbf16>, vector<8x64xbf16>, vector<8x64xf32> -> vector<8x64xf32>
    %62 = tpu.concatenate %40, %61 in 1 : vector<8x64xf32>, vector<8x64xf32> -> vector<8x128xf32>
    %63 = vector.extract_strided_slice %19 {offsets = [8, 0], sizes = [8, 64], strides = [1, 1]} : vector<16x384xf32> to vector<8x64xf32>
    %64 = arith.truncf %63 : vector<8x64xf32> to vector<8x64xbf16>
    %65 = vector.extract_strided_slice %19 {offsets = [8, 128], sizes = [8, 64], strides = [1, 1]} : vector<16x384xf32> to vector<8x64xf32>
    %66 = arith.truncf %65 : vector<8x64xf32> to vector<8x64xbf16>
    %67 = vector.extract_strided_slice %19 {offsets = [8, 256], sizes = [8, 64], strides = [1, 1]} : vector<16x384xf32> to vector<8x64xf32>
    %68 = arith.truncf %67 : vector<8x64xf32> to vector<8x64xbf16>
    %cst_18 = arith.constant dense<0.000000e+00> : vector<8x8xf32>
    %69 = tpu.matmul %64, %66, %cst_18 {dimension_numbers = #tpu.dot_dimension_numbers<[1], [1], [0], [0], [0, 0, 1, 0], [], []>} : vector<8x64xbf16>, vector<8x64xbf16>, vector<8x8xf32> -> vector<8x8xf32>
    %cst_19 = arith.constant 1.250000e-01 : f32
    %70 = vector.broadcast %cst_19 : f32 to vector<8x8xf32>
    %71 = arith.mulf %69, %70 : vector<8x8xf32>
    %cst_20 = arith.constant dense<0xFF800000> : vector<8xf32>
    %72 = vector.multi_reduction <maximumf>, %71, %cst_20 [1] : vector<8x8xf32> to vector<8xf32>
    %73 = vector.shape_cast %72 : vector<8xf32> to vector<8x1xf32>
    %74 = vector.broadcast %73 : vector<8x1xf32> to vector<8x8xf32>
    %75 = arith.subf %71, %74 : vector<8x8xf32>
    %76 = math.exp %75 : vector<8x8xf32>
    %cst_21 = arith.constant dense<0.000000e+00> : vector<8xf32>
    %77 = vector.multi_reduction <add>, %76, %cst_21 [1] : vector<8x8xf32> to vector<8xf32>
    %78 = vector.shape_cast %77 : vector<8xf32> to vector<8x1xf32>
    %79 = tpu.reciprocal %78 {approx = true} : vector<8x1xf32> -> vector<8x1xf32>
    %80 = vector.broadcast %79 : vector<8x1xf32> to vector<8x8xf32>
    %81 = arith.mulf %76, %80 : vector<8x8xf32>
    %82 = arith.truncf %81 : vector<8x8xf32> to vector<8x8xbf16>
    %cst_22 = arith.constant dense<0.000000e+00> : vector<8x64xf32>
    %83 = tpu.matmul %82, %68, %cst_22 {dimension_numbers = #tpu.dot_dimension_numbers<[1], [0], [0], [1], [0, 0, 1, 1], [], []>} : vector<8x8xbf16>, vector<8x64xbf16>, vector<8x64xf32> -> vector<8x64xf32>
    %84 = vector.extract_strided_slice %19 {offsets = [8, 64], sizes = [8, 64], strides = [1, 1]} : vector<16x384xf32> to vector<8x64xf32>
    %85 = arith.truncf %84 : vector<8x64xf32> to vector<8x64xbf16>
    %86 = vector.extract_strided_slice %19 {offsets = [8, 192], sizes = [8, 64], strides = [1, 1]} : vector<16x384xf32> to vector<8x64xf32>
    %87 = arith.truncf %86 : vector<8x64xf32> to vector<8x64xbf16>
    %88 = vector.extract_strided_slice %19 {offsets = [8, 320], sizes = [8, 64], strides = [1, 1]} : vector<16x384xf32> to vector<8x64xf32>
    %89 = arith.truncf %88 : vector<8x64xf32> to vector<8x64xbf16>
    %cst_23 = arith.constant dense<0.000000e+00> : vector<8x8xf32>
    %90 = tpu.matmul %85, %87, %cst_23 {dimension_numbers = #tpu.dot_dimension_numbers<[1], [1], [0], [0], [0, 0, 1, 0], [], []>} : vector<8x64xbf16>, vector<8x64xbf16>, vector<8x8xf32> -> vector<8x8xf32>
    %cst_24 = arith.constant 1.250000e-01 : f32
    %91 = vector.broadcast %cst_24 : f32 to vector<8x8xf32>
    %92 = arith.mulf %90, %91 : vector<8x8xf32>
    %cst_25 = arith.constant dense<0xFF800000> : vector<8xf32>
    %93 = vector.multi_reduction <maximumf>, %92, %cst_25 [1] : vector<8x8xf32> to vector<8xf32>
    %94 = vector.shape_cast %93 : vector<8xf32> to vector<8x1xf32>
    %95 = vector.broadcast %94 : vector<8x1xf32> to vector<8x8xf32>
    %96 = arith.subf %92, %95 : vector<8x8xf32>
    %97 = math.exp %96 : vector<8x8xf32>
    %cst_26 = arith.constant dense<0.000000e+00> : vector<8xf32>
    %98 = vector.multi_reduction <add>, %97, %cst_26 [1] : vector<8x8xf32> to vector<8xf32>
    %99 = vector.shape_cast %98 : vector<8xf32> to vector<8x1xf32>
    %100 = tpu.reciprocal %99 {approx = true} : vector<8x1xf32> -> vector<8x1xf32>
    %101 = vector.broadcast %100 : vector<8x1xf32> to vector<8x8xf32>
    %102 = arith.mulf %97, %101 : vector<8x8xf32>
    %103 = arith.truncf %102 : vector<8x8xf32> to vector<8x8xbf16>
    %cst_27 = arith.constant dense<0.000000e+00> : vector<8x64xf32>
    %104 = tpu.matmul %103, %89, %cst_27 {dimension_numbers = #tpu.dot_dimension_numbers<[1], [0], [0], [1], [0, 0, 1, 1], [], []>} : vector<8x8xbf16>, vector<8x64xbf16>, vector<8x64xf32> -> vector<8x64xf32>
    %105 = tpu.concatenate %83, %104 in 1 : vector<8x64xf32>, vector<8x64xf32> -> vector<8x128xf32>
    %106 = tpu.concatenate %62, %105 in 0 : vector<8x128xf32>, vector<8x128xf32> -> vector<16x128xf32>
    %107 = arith.truncf %106 : vector<16x128xf32> to vector<16x128xbf16>
    %c0_28 = arith.constant 0 : index
    %c0_29 = arith.constant 0 : index
    %c0_30 = arith.constant 0 : index
    %108 = vector.load %arg11[%c0_28, %c0_29, %c0_30] : memref<1x128x128xbf16, #tpu.memory_space<vmem>>, vector<1x128x128xbf16>
    %109 = vector.shape_cast %108 : vector<1x128x128xbf16> to vector<128x128xbf16>
    %cst_31 = arith.constant dense<0.000000e+00> : vector<16x128xf32>
    %110 = tpu.matmul %107, %109, %cst_31 {dimension_numbers = #tpu.dot_dimension_numbers<[1], [0], [0], [1], [0, 0, 1, 1], [], []>} : vector<16x128xbf16>, vector<128x128xbf16>, vector<16x128xf32> -> vector<16x128xf32>
    %111 = vector.broadcast %7 : vector<1x128xf32> to vector<16x128xf32>
    %112 = arith.addf %110, %111 : vector<16x128xf32>
    %113 = arith.addf %3, %112 : vector<16x128xf32>
    %cst_32 = arith.constant dense<0.000000e+00> : vector<16xf32>
    %114 = vector.multi_reduction <add>, %113, %cst_32 [1] : vector<16x128xf32> to vector<16xf32>
    %115 = vector.shape_cast %114 : vector<16xf32> to vector<16x1xf32>
    %cst_33 = arith.constant 1.280000e+02 : f32
    %116 = vector.broadcast %cst_33 : f32 to vector<16x1xf32>
    %117 = arith.divf %115, %116 : vector<16x1xf32>
    %118 = vector.broadcast %117 : vector<16x1xf32> to vector<16x128xf32>
    %119 = arith.subf %113, %118 : vector<16x128xf32>
    %120 = vector.broadcast %117 : vector<16x1xf32> to vector<16x128xf32>
    %121 = arith.subf %113, %120 : vector<16x128xf32>
    %122 = arith.mulf %119, %121 : vector<16x128xf32>
    %cst_34 = arith.constant dense<0.000000e+00> : vector<16xf32>
    %123 = vector.multi_reduction <add>, %122, %cst_34 [1] : vector<16x128xf32> to vector<16xf32>
    %124 = vector.shape_cast %123 : vector<16xf32> to vector<16x1xf32>
    %cst_35 = arith.constant 1.280000e+02 : f32
    %125 = vector.broadcast %cst_35 : f32 to vector<16x1xf32>
    %126 = arith.divf %124, %125 : vector<16x1xf32>
    %127 = vector.broadcast %117 : vector<16x1xf32> to vector<16x128xf32>
    %128 = arith.subf %113, %127 : vector<16x128xf32>
    %cst_36 = arith.constant 9.99999996E-13 : f32
    %129 = vector.broadcast %cst_36 : f32 to vector<16x1xf32>
    %130 = arith.addf %126, %129 : vector<16x1xf32>
    %131 = math.rsqrt %130 : vector<16x1xf32>
    %132 = vector.broadcast %131 : vector<16x1xf32> to vector<16x128xf32>
    %133 = arith.mulf %128, %132 : vector<16x128xf32>
    %134 = vector.broadcast %10 : vector<1x128xf32> to vector<16x128xf32>
    %135 = arith.mulf %133, %134 : vector<16x128xf32>
    %136 = vector.broadcast %11 : vector<1x128xf32> to vector<16x128xf32>
    %137 = arith.addf %135, %136 : vector<16x128xf32>
    %138 = arith.truncf %137 : vector<16x128xf32> to vector<16x128xbf16>
    %c0_37 = arith.constant 0 : index
    %c0_38 = arith.constant 0 : index
    %c0_39 = arith.constant 0 : index
    %139 = vector.load %arg12[%c0_37, %c0_38, %c0_39] : memref<1x128x256xbf16, #tpu.memory_space<vmem>>, vector<1x128x256xbf16>
    %140 = vector.shape_cast %139 : vector<1x128x256xbf16> to vector<128x256xbf16>
    %cst_40 = arith.constant dense<0.000000e+00> : vector<16x256xf32>
    %141 = tpu.matmul %138, %140, %cst_40 {dimension_numbers = #tpu.dot_dimension_numbers<[1], [0], [0], [1], [0, 0, 1, 1], [], []>} : vector<16x128xbf16>, vector<128x256xbf16>, vector<16x256xf32> -> vector<16x256xf32>
    %142 = vector.broadcast %8 : vector<1x256xf32> to vector<16x256xf32>
    %143 = arith.addf %141, %142 : vector<16x256xf32>
    %cst_41 = arith.constant 5.000000e-01 : f32
    %144 = vector.broadcast %cst_41 : f32 to vector<16x256xf32>
    %145 = arith.mulf %144, %143 : vector<16x256xf32>
    %cst_42 = arith.constant 4.471500e-02 : f32
    %146 = vector.broadcast %cst_42 : f32 to vector<16x256xf32>
    %147 = arith.mulf %146, %143 : vector<16x256xf32>
    %148 = arith.mulf %147, %143 : vector<16x256xf32>
    %149 = arith.mulf %148, %143 : vector<16x256xf32>
    %150 = arith.addf %143, %149 : vector<16x256xf32>
    %cst_43 = arith.constant 0.797884583 : f32
    %151 = vector.broadcast %cst_43 : f32 to vector<16x256xf32>
    %152 = arith.mulf %151, %150 : vector<16x256xf32>
    %153 = math.tanh %152 : vector<16x256xf32>
    %cst_44 = arith.constant 1.000000e+00 : f32
    %154 = vector.broadcast %cst_44 : f32 to vector<16x256xf32>
    %155 = arith.addf %154, %153 : vector<16x256xf32>
    %156 = arith.mulf %145, %155 : vector<16x256xf32>
    %157 = arith.truncf %156 : vector<16x256xf32> to vector<16x256xbf16>
    %c0_45 = arith.constant 0 : index
    %c0_46 = arith.constant 0 : index
    %c0_47 = arith.constant 0 : index
    %158 = vector.load %arg13[%c0_45, %c0_46, %c0_47] : memref<1x256x128xbf16, #tpu.memory_space<vmem>>, vector<1x256x128xbf16>
    %159 = vector.shape_cast %158 : vector<1x256x128xbf16> to vector<256x128xbf16>
    %cst_48 = arith.constant dense<0.000000e+00> : vector<16x128xf32>
    %160 = tpu.matmul %157, %159, %cst_48 {dimension_numbers = #tpu.dot_dimension_numbers<[1], [0], [0], [1], [0, 0, 1, 1], [], []>} : vector<16x256xbf16>, vector<256x128xbf16>, vector<16x128xf32> -> vector<16x128xf32>
    %161 = vector.broadcast %9 : vector<1x128xf32> to vector<16x128xf32>
    %162 = arith.addf %160, %161 : vector<16x128xf32>
    %163 = arith.addf %137, %162 : vector<16x128xf32>
    %cst_49 = arith.constant dense<0.000000e+00> : vector<16xf32>
    %164 = vector.multi_reduction <add>, %163, %cst_49 [1] : vector<16x128xf32> to vector<16xf32>
    %165 = vector.shape_cast %164 : vector<16xf32> to vector<16x1xf32>
    %cst_50 = arith.constant 1.280000e+02 : f32
    %166 = vector.broadcast %cst_50 : f32 to vector<16x1xf32>
    %167 = arith.divf %165, %166 : vector<16x1xf32>
    %168 = vector.broadcast %167 : vector<16x1xf32> to vector<16x128xf32>
    %169 = arith.subf %163, %168 : vector<16x128xf32>
    %170 = vector.broadcast %167 : vector<16x1xf32> to vector<16x128xf32>
    %171 = arith.subf %163, %170 : vector<16x128xf32>
    %172 = arith.mulf %169, %171 : vector<16x128xf32>
    %cst_51 = arith.constant dense<0.000000e+00> : vector<16xf32>
    %173 = vector.multi_reduction <add>, %172, %cst_51 [1] : vector<16x128xf32> to vector<16xf32>
    %174 = vector.shape_cast %173 : vector<16xf32> to vector<16x1xf32>
    %cst_52 = arith.constant 1.280000e+02 : f32
    %175 = vector.broadcast %cst_52 : f32 to vector<16x1xf32>
    %176 = arith.divf %174, %175 : vector<16x1xf32>
    %177 = vector.broadcast %167 : vector<16x1xf32> to vector<16x128xf32>
    %178 = arith.subf %163, %177 : vector<16x128xf32>
    %cst_53 = arith.constant 9.99999996E-13 : f32
    %179 = vector.broadcast %cst_53 : f32 to vector<16x1xf32>
    %180 = arith.addf %176, %179 : vector<16x1xf32>
    %181 = math.rsqrt %180 : vector<16x1xf32>
    %182 = vector.broadcast %181 : vector<16x1xf32> to vector<16x128xf32>
    %183 = arith.mulf %178, %182 : vector<16x128xf32>
    %184 = vector.broadcast %12 : vector<1x128xf32> to vector<16x128xf32>
    %185 = arith.mulf %183, %184 : vector<16x128xf32>
    %186 = vector.broadcast %13 : vector<1x128xf32> to vector<16x128xf32>
    %187 = arith.addf %185, %186 : vector<16x128xf32>
    %c0_54 = arith.constant 0 : index
    %c0_55 = arith.constant 0 : index
    %188 = vector.load %arg16[%c0_54, %c0_55] : memref<16x128xf32, #tpu.memory_space<vmem>>, vector<16x128xf32>
    tpu.vector_store %arg16[%c0_54, %c0_55], %187 {strides = array<i32>} : memref<16x128xf32, #tpu.memory_space<vmem>>, vector<16x128xf32>,
    %c0_56 = arith.constant 0 : index
    %c0_57 = arith.constant 0 : index
    %189 = vector.load %arg15[%c0_56, %c0_57] : memref<16x128xf32, #tpu.memory_space<vmem>>, vector<16x128xf32>
    tpu.vector_store %arg15[%c0_56, %c0_57], %187 {strides = array<i32>} : memref<16x128xf32, #tpu.memory_space<vmem>>, vector<16x128xf32>,
    return
  }
  func.func @transform_0(%arg0: i32) -> (i32, i32) {
    %c0_i32 = arith.constant 0 : i32
    %c0_i32_0 = arith.constant 0 : i32
    %c0_i32_1 = arith.constant 0 : i32
    return %c0_i32, %c0_i32_0 : i32, i32
  }
  func.func @transform_1(%arg0: i32) -> (i32, i32) {
    %c0_i32 = arith.constant 0 : i32
    %c0_i32_0 = arith.constant 0 : i32
    %c0_i32_1 = arith.constant 0 : i32
    return %c0_i32, %c0_i32_0 : i32, i32
  }
  func.func @transform_2(%arg0: i32) -> (i32, i32) {
    %c0_i32 = arith.constant 0 : i32
    %c0_i32_0 = arith.constant 0 : i32
    %c0_i32_1 = arith.constant 0 : i32
    return %c0_i32, %c0_i32_0 : i32, i32
  }
  func.func @transform_3(%arg0: i32) -> (i32, i32) {
    %c0_i32 = arith.constant 0 : i32
    %c0_i32_0 = arith.constant 0 : i32
    %c0_i32_1 = arith.constant 0 : i32
    return %c0_i32, %c0_i32_0 : i32, i32
  }
  func.func @transform_4(%arg0: i32) -> (i32, i32) {
    %c0_i32 = arith.constant 0 : i32
    %c0_i32_0 = arith.constant 0 : i32
    %c0_i32_1 = arith.constant 0 : i32
    return %c0_i32, %c0_i32_0 : i32, i32
  }
  func.func @transform_5(%arg0: i32) -> (i32, i32) {
    %c0_i32 = arith.constant 0 : i32
    %c0_i32_0 = arith.constant 0 : i32
    %c0_i32_1 = arith.constant 0 : i32
    return %c0_i32, %c0_i32_0 : i32, i32
  }
  func.func @transform_6(%arg0: i32) -> (i32, i32) {
    %c0_i32 = arith.constant 0 : i32
    %c0_i32_0 = arith.constant 0 : i32
    %c0_i32_1 = arith.constant 0 : i32
    return %c0_i32, %c0_i32_0 : i32, i32
  }
  func.func @transform_7(%arg0: i32) -> (i32, i32) {
    %c0_i32 = arith.constant 0 : i32
    %c0_i32_0 = arith.constant 0 : i32
    %c0_i32_1 = arith.constant 0 : i32
    return %c0_i32, %c0_i32_0 : i32, i32
  }
  func.func @transform_8(%arg0: i32) -> (i32, i32) {
    %c0_i32 = arith.constant 0 : i32
    %c0_i32_0 = arith.constant 0 : i32
    %c0_i32_1 = arith.constant 0 : i32
    return %c0_i32, %c0_i32_0 : i32, i32
  }
  func.func @transform_9(%arg0: i32) -> (i32, i32, i32) {
    %c0_i32 = arith.constant 0 : i32
    %c0_i32_0 = arith.constant 0 : i32
    %c0_i32_1 = arith.constant 0 : i32
    return %arg0, %c0_i32, %c0_i32_0 : i32, i32, i32
  }
  func.func @transform_10(%arg0: i32) -> (i32, i32, i32) {
    %c0_i32 = arith.constant 0 : i32
    %c0_i32_0 = arith.constant 0 : i32
    %c0_i32_1 = arith.constant 0 : i32
    return %arg0, %c0_i32, %c0_i32_0 : i32, i32, i32
  }
  func.func @transform_11(%arg0: i32) -> (i32, i32, i32) {
    %c0_i32 = arith.constant 0 : i32
    %c0_i32_0 = arith.constant 0 : i32
    %c0_i32_1 = arith.constant 0 : i32
    return %arg0, %c0_i32, %c0_i32_0 : i32, i32, i32
  }
  func.func @transform_12(%arg0: i32) -> (i32, i32, i32) {
    %c0_i32 = arith.constant 0 : i32
    %c0_i32_0 = arith.constant 0 : i32
    %c0_i32_1 = arith.constant 0 : i32
    return %arg0, %c0_i32, %c0_i32_0 : i32, i32, i32
  }
  func.func @transform_13(%arg0: i32) -> (i32, i32, i32) {
    %c0_i32 = arith.constant 0 : i32
    %c0_i32_0 = arith.constant 0 : i32
    %c0_i32_1 = arith.constant 0 : i32
    return %arg0, %c0_i32, %c0_i32_0 : i32, i32, i32
  }
  func.func @transform_14(%arg0: i32) -> (i32, i32) {
    %c0_i32 = arith.constant 0 : i32
    %c0_i32_0 = arith.constant 0 : i32
    %c0_i32_1 = arith.constant 0 : i32
    return %c0_i32, %c0_i32_0 : i32, i32
  }
}

</mosaic_0001>

<llo_original>
// kernel: glyph_model_forward.1
$region0: #{glyph_model_forward.1}
  #allocation0 [shape = 'u32[]', space=smem, size = 0x4, offset = 0x4, fixed_abs, tag = 'smem constant byte address 0x4 - core index']
  #allocation1 [shape = 'u32[144,128]{1,0:T(1,128)}', space=vmem, size = 0x12000, scoped, tag = 'internal scratch']
  #allocation2 [shape = 'f32[16,128]{1,0:T(8,128)}', space=vmem, size = 0x2000, scoped, tag = 'scratch operand']
  %s0 = inlined_call_operand.vmem [shape: s32[16,1], index: 0, kind: input, shape index: {}]
  %s1 = inlined_call_operand.vmem [shape: s32[16,1], index: 1, kind: input, shape index: {}]
  %s2 = inlined_call_operand.vmem [shape: s32[16,1], index: 2, kind: input, shape index: {}]
  %s3 = inlined_call_operand.vmem [shape: f32[64,128], index: 3, kind: input, shape index: {}]
  %s4 = inlined_call_operand.hbm [shape: f32[32,128], index: 4, kind: input, shape index: {}]
  %s5 = inlined_call_operand.vmem [shape: f32[2,128], index: 5, kind: input, shape index: {}]
  %s6 = inlined_call_operand.hbm [shape: f32[64,256], index: 6, kind: input, shape index: {}]
  %s7 = inlined_call_operand.hbm [shape: bf16[256,128], index: 7, kind: input, shape index: {}]
  %s8 = inlined_call_operand.vmem [shape: f32[3,128], index: 8, kind: input, shape index: {}]
  %s9 = inlined_call_operand.hbm [shape: bf16[2,128,384], index: 9, kind: input, shape index: {}]
  %s10 = inlined_call_operand.hbm [shape: bf16[2,128,128], index: 10, kind: input, shape index: {}]
  %s11 = inlined_call_operand.hbm [shape: bf16[2,128,256], index: 11, kind: input, shape index: {}]
  %s12 = inlined_call_operand.hbm [shape: bf16[2,256,128], index: 12, kind: input, shape index: {}]
  %s13 = inlined_call_operand.hbm [shape: f32[2,8,384], index: 13, kind: input, shape index: {}]
  %s14 = inlined_call_operand.hbm [shape: f32[16,128], index: 14, kind: output, shape index: {}]
  %s15 = sld [smem:[#allocation0]]
  $region125: #{glyph_model_forward.1} parent=0
    _
  %s17 = ssub.s32 1, %s15
  %s18 = scalar_select 0, %s17, %s15
  $region1: #{glyph_model_forward.1} parent=0
    #allocation3 [shape = 'u8[16384]{0}', space=vmem, size = 0x4000, scoped, tag = 'input window, operand 4, single buffered']
    #allocation4 [shape = 's32[2]{0}', space=sflag, size = 0x8, scoped, tag = 'scoped memory for glyph_model_forward.1']
    #allocation5 [shape = 's32[2]{0}', space=sflag, size = 0x8, scoped, tag = 'scoped memory for glyph_model_forward.1']
    #allocation6 [shape = 'u8[65536]{0}', space=vmem, size = 0x10000, scoped, tag = 'input window, operand 6, single buffered']
    #allocation7 [shape = 's32[1]{0}', space=sflag, size = 0x4, scoped, tag = 'scoped memory for glyph_model_forward.1']
    #allocation8 [shape = 'u8[65536]{0}', space=vmem, size = 0x10000, scoped, tag = 'input window, operand 7, single buffered']
    #allocation9 [shape = 'u8[196608]{0}', space=vmem, size = 0x30000, scoped, tag = 'input window, operand 9']
    #allocation10 [shape = 's32[2]{0}', space=sflag, size = 0x8, scoped, tag = 'scoped memory for glyph_model_forward.1']
    #allocation11 [shape = 'u8[65536]{0}', space=vmem, size = 0x10000, scoped, tag = 'input window, operand 10']
    #allocation12 [shape = 'u8[131072]{0}', space=vmem, size = 0x20000, scoped, tag = 'input window, operand 11']
    #allocation13 [shape = 's32[2]{0}', space=sflag, size = 0x8, scoped, tag = 'scoped memory for glyph_model_forward.1']
    #allocation14 [shape = 'u8[131072]{0}', space=vmem, size = 0x20000, scoped, tag = 'input window, operand 12']
    #allocation15 [shape = 'u8[24576]{0}', space=vmem, size = 0x6000, scoped, tag = 'input window, operand 13']
    #allocation16 [shape = 's32[2]{0}', space=sflag, size = 0x8, scoped, tag = 'scoped memory for glyph_model_forward.1']
    #allocation17 [shape = 'u8[8192]{0}', space=vmem, size = 0x2000, scoped, tag = 'output window, operand 0, single buffered']
    %19 = vsyncpa [#allocation4], 0
    %20 = vsyncpa [#allocation7], 0
    %21 = vsyncpa [#allocation10], 0
    %s22 = scalar_lea.sflag [#allocation10], 1
    %23 = vsyncpa %s22, 0
    %24 = vsyncpa [#allocation13], 0
    %s25 = scalar_lea.sflag [#allocation13], 1
    %26 = vsyncpa %s25, 0
    %27 = vsyncpa [#allocation16], 0
    %s28 = scalar_lea.sflag [#allocation16], 1
    %29 = vsyncpa %s28, 0
    %30 = vsyncpa [#allocation5], 0
    loop: start=0, step=1, limit=4
    $region2: #{glyph_model_forward.1} parent=1 // loop_pre_header
      _
    $region3: #{glyph_model_forward.1} parent=1 // loop_header
      %s32 = sphi 0, %s36
      %p33 = scmp.ge.s32.totalorder %s32, 4
      %s40 = sphi 0, %s40
      %s42 = sphi 0, %s40
      %s43 = sphi 0, %s42
      %s57 = sphi 0, %s43
      %s61 = sphi 0, %s61
      %s63 = sphi 0, %s61
      %s64 = sphi 0, %s63
      %s78 = sphi 0, %s64
      %s82 = sphi 0, %s82
      %s84 = sphi 0, %s82
      %s85 = sphi 0, %s84
      %s99 = sphi 0, %s85
      %s103 = sphi 0, %s103
      %s105 = sphi 0, %s103
      %s106 = sphi 0, %s105
      %s120 = sphi 0, %s106
      %s124 = sphi 0, %s124
      %s126 = sphi 0, %s124
      %s127 = sphi 0, %s126
      %s141 = sphi 0, %s127
      %s145 = sphi 0, %s145
      %s147 = sphi 0, %s145
      %s148 = sphi 0, %s147
      %s162 = sphi 0, %s148
      %s166 = sphi 0, %s166
      %s168 = sphi 0, %s166
      %s169 = sphi 0, %s168
      %s183 = sphi 0, %s169
      %s187 = sphi 0, %s187
      %s189 = sphi 0, %s187
      %s190 = sphi 0, %s189
      %s204 = sphi 0, %s190
      %s208 = sphi 0, %s208
      %s210 = sphi 0, %s208
      %s211 = sphi 0, %s210
      %s225 = sphi 0, %s211
      %s231 = sphi 0, %s233
      %s234 = sphi 0, %s231
      %s235 = sphi 0, %s234
      %s251 = sphi 0, %s235
      %s257 = sphi 0, %s259
      %s260 = sphi 0, %s257
      %s261 = sphi 0, %s260
      %s277 = sphi 0, %s261
      %s283 = sphi 0, %s285
      %s286 = sphi 0, %s283
      %s287 = sphi 0, %s286
      %s303 = sphi 0, %s287
      %s309 = sphi 0, %s311
      %s312 = sphi 0, %s309
      %s313 = sphi 0, %s312
      %s329 = sphi 0, %s313
      %s335 = sphi 0, %s337
      %s338 = sphi 0, %s335
      %s339 = sphi 0, %s338
      %s355 = sphi 0, %s339
      %s359 = sphi 0, %s359
      %s361 = sphi 0, %s359
      %s362 = sphi 0, %s361
      %s376 = sphi 0, %s362
    $region4: #{glyph_model_forward.1} parent=1 // loop_header_branch
      %35 = sbr.rel (%p33) target = $region8
    $region5: #{glyph_model_forward.1} parent=1 // loop_body
      %s37 = ssub.s32 %s32, 1
      %s38 = ssub.s32 %s32, 2
      %s39 = sadd.s32 %s32, 1
      %s41 = sadd.s32 %s40, 1
      %p44 = scmp.eq.s32.totalorder %s32, 1
      %p45 = scmp.ne.s32.totalorder %s40, %s42
      %p46 = scmp.eq.s32.totalorder %s32, 0
      %p47 = por %p45, %p46
      %p48 = scmp.ne.s32.totalorder %s40, %s42
      %p49 = scmp.eq.s32.totalorder %s37, 1
      %p50 = por %p48, %p49
      %p51 = scmp.ne.s32.totalorder %s42, %s43
      %p52 = scmp.eq.s32.totalorder %s37, 0
      %p53 = por %p51, %p52
      %p54 = scmp.ne.s32.totalorder %s42, %s43
      %p55 = scmp.eq.s32.totalorder %s38, 1
      %p56 = por %p54, %p55
      %p58 = scmp.ne.s32.totalorder %s43, %s57
      %p59 = scmp.eq.s32.totalorder %s38, 0
      %p60 = por %p58, %p59
      %s62 = sadd.s32 %s61, 1
      %p65 = scmp.eq.s32.totalorder %s32, 1
      %p66 = scmp.ne.s32.totalorder %s61, %s63
      %p67 = scmp.eq.s32.totalorder %s32, 0
      %p68 = por %p66, %p67
      %p69 = scmp.ne.s32.totalorder %s61, %s63
      %p70 = scmp.eq.s32.totalorder %s37, 1
      %p71 = por %p69, %p70
      %p72 = scmp.ne.s32.totalorder %s63, %s64
      %p73 = scmp.eq.s32.totalorder %s37, 0
      %p74 = por %p72, %p73
      %p75 = scmp.ne.s32.totalorder %s63, %s64
      %p76 = scmp.eq.s32.totalorder %s38, 1
      %p77 = por %p75, %p76
      %p79 = scmp.ne.s32.totalorder %s64, %s78
      %p80 = scmp.eq.s32.totalorder %s38, 0
      %p81 = por %p79, %p80
      %s83 = sadd.s32 %s82, 1
      %p86 = scmp.eq.s32.totalorder %s32, 1
      %p87 = scmp.ne.s32.totalorder %s82, %s84
      %p88 = scmp.eq.s32.totalorder %s32, 0
      %p89 = por %p87, %p88
      %p90 = scmp.ne.s32.totalorder %s82, %s84
      %p91 = scmp.eq.s32.totalorder %s37, 1
      %p92 = por %p90, %p91
      %p93 = scmp.ne.s32.totalorder %s84, %s85
      %p94 = scmp.eq.s32.totalorder %s37, 0
      %p95 = por %p93, %p94
      %p96 = scmp.ne.s32.totalorder %s84, %s85
      %p97 = scmp.eq.s32.totalorder %s38, 1
      %p98 = por %p96, %p97
      %p100 = scmp.ne.s32.totalorder %s85, %s99
      %p101 = scmp.eq.s32.totalorder %s38, 0
      %p102 = por %p100, %p101
      %s104 = sadd.s32 %s103, 1
      %p107 = scmp.eq.s32.totalorder %s32, 1
      %p108 = scmp.ne.s32.totalorder %s103, %s105
      %p109 = scmp.eq.s32.totalorder %s32, 0
      %p110 = por %p108, %p109
      %p111 = scmp.ne.s32.totalorder %s103, %s105
      %p112 = scmp.eq.s32.totalorder %s37, 1
      %p113 = por %p111, %p112
      %p114 = scmp.ne.s32.totalorder %s105, %s106
      %p115 = scmp.eq.s32.totalorder %s37, 0
      %p116 = por %p114, %p115
      %p117 = scmp.ne.s32.totalorder %s105, %s106
      %p118 = scmp.eq.s32.totalorder %s38, 1
      %p119 = por %p117, %p118
      %p121 = scmp.ne.s32.totalorder %s106, %s120
      %p122 = scmp.eq.s32.totalorder %s38, 0
      %p123 = por %p121, %p122
      %s125 = sadd.s32 %s124, 1
      %p128 = scmp.eq.s32.totalorder %s32, 1
      %p129 = scmp.ne.s32.totalorder %s124, %s126
      %p130 = scmp.eq.s32.totalorder %s32, 0
      %p131 = por %p129, %p130
      %p132 = scmp.ne.s32.totalorder %s124, %s126
      %p133 = scmp.eq.s32.totalorder %s37, 1
      %p134 = por %p132, %p133
      %p135 = scmp.ne.s32.totalorder %s126, %s127
      %p136 = scmp.eq.s32.totalorder %s37, 0
      %p137 = por %p135, %p136
      %p138 = scmp.ne.s32.totalorder %s126, %s127
      %p139 = scmp.eq.s32.totalorder %s38, 1
      %p140 = por %p138, %p139
      %p142 = scmp.ne.s32.totalorder %s127, %s141
      %p143 = scmp.eq.s32.totalorder %s38, 0
      %p144 = por %p142, %p143
      %s146 = sadd.s32 %s145, 1
      %p149 = scmp.eq.s32.totalorder %s32, 1
      %p150 = scmp.ne.s32.totalorder %s145, %s147
      %p151 = scmp.eq.s32.totalorder %s32, 0
      %p152 = por %p150, %p151
      %p153 = scmp.ne.s32.totalorder %s145, %s147
      %p154 = scmp.eq.s32.totalorder %s37, 1
      %p155 = por %p153, %p154
      %p156 = scmp.ne.s32.totalorder %s147, %s148
      %p157 = scmp.eq.s32.totalorder %s37, 0
      %p158 = por %p156, %p157
      %p159 = scmp.ne.s32.totalorder %s147, %s148
      %p160 = scmp.eq.s32.totalorder %s38, 1
      %p161 = por %p159, %p160
      %p163 = scmp.ne.s32.totalorder %s148, %s162
      %p164 = scmp.eq.s32.totalorder %s38, 0
      %p165 = por %p163, %p164
      %s167 = sadd.s32 %s166, 1
      %p170 = scmp.eq.s32.totalorder %s32, 1
      %p171 = scmp.ne.s32.totalorder %s166, %s168
      %p172 = scmp.eq.s32.totalorder %s32, 0
      %p173 = por %p171, %p172
      %p174 = scmp.ne.s32.totalorder %s166, %s168
      %p175 = scmp.eq.s32.totalorder %s37, 1
      %p176 = por %p174, %p175
      %p177 = scmp.ne.s32.totalorder %s168, %s169
      %p178 = scmp.eq.s32.totalorder %s37, 0
      %p179 = por %p177, %p178
      %p180 = scmp.ne.s32.totalorder %s168, %s169
      %p181 = scmp.eq.s32.totalorder %s38, 1
      %p182 = por %p180, %p181
      %p184 = scmp.ne.s32.totalorder %s169, %s183
      %p185 = scmp.eq.s32.totalorder %s38, 0
      %p186 = por %p184, %p185
      %s188 = sadd.s32 %s187, 1
      %p191 = scmp.eq.s32.totalorder %s32, 1
      %p192 = scmp.ne.s32.totalorder %s187, %s189
      %p193 = scmp.eq.s32.totalorder %s32, 0
      %p194 = por %p192, %p193
      %p195 = scmp.ne.s32.totalorder %s187, %s189
      %p196 = scmp.eq.s32.totalorder %s37, 1
      %p197 = por %p195, %p196
      %p198 = scmp.ne.s32.totalorder %s189, %s190
      %p199 = scmp.eq.s32.totalorder %s37, 0
      %p200 = por %p198, %p199
      %p201 = scmp.ne.s32.totalorder %s189, %s190
      %p202 = scmp.eq.s32.totalorder %s38, 1
      %p203 = por %p201, %p202
      %p205 = scmp.ne.s32.totalorder %s190, %s204
      %p206 = scmp.eq.s32.totalorder %s38, 0
      %p207 = por %p205, %p206
      %s209 = sadd.s32 %s208, 1
      %p212 = scmp.eq.s32.totalorder %s32, 1
      %p213 = scmp.ne.s32.totalorder %s208, %s210
      %p214 = scmp.eq.s32.totalorder %s32, 0
      %p215 = por %p213, %p214
      %p216 = scmp.ne.s32.totalorder %s208, %s210
      %p217 = scmp.eq.s32.totalorder %s37, 1
      %p218 = por %p216, %p217
      %p219 = scmp.ne.s32.totalorder %s210, %s211
      %p220 = scmp.eq.s32.totalorder %s37, 0
      %p221 = por %p219, %p220
      %p222 = scmp.ne.s32.totalorder %s210, %s211
      %p223 = scmp.eq.s32.totalorder %s38, 1
      %p224 = por %p222, %p223
      %p226 = scmp.ne.s32.totalorder %s211, %s225
      %p227 = scmp.eq.s32.totalorder %s38, 0
      %p228 = por %p226, %p227
      %s229 = ssub.s32 %s32, %s39
      %p230 = scmp.eq.s32.totalorder %s229, 0
      %s232 = sadd.s32 %s231, 1
      %s233 = scalar_select %p230, %s231, %s232
      %p236 = pneg %p230
      %p237 = scmp.eq.s32.totalorder %s32, 1
      %p238 = por %p236, %p237
      %p239 = scmp.ne.s32.totalorder %s231, %s234
      %p240 = scmp.eq.s32.totalorder %s32, 0
      %p241 = por %p239, %p240
      %p242 = scmp.ne.s32.totalorder %s231, %s234
      %p243 = scmp.eq.s32.totalorder %s37, 1
      %p244 = por %p242, %p243
      %p245 = scmp.ne.s32.totalorder %s234, %s235
      %p246 = scmp.eq.s32.totalorder %s37, 0
      %p247 = por %p245, %p246
      %p248 = scmp.ne.s32.totalorder %s234, %s235
      %p249 = scmp.eq.s32.totalorder %s38, 1
      %p250 = por %p248, %p249
      %p252 = scmp.ne.s32.totalorder %s235, %s251
      %p253 = scmp.eq.s32.totalorder %s38, 0
      %p254 = por %p252, %p253
      %s255 = ssub.s32 %s32, %s39
      %p256 = scmp.eq.s32.totalorder %s255, 0
      %s258 = sadd.s32 %s257, 1
      %s259 = scalar_select %p256, %s257, %s258
      %p262 = pneg %p256
      %p263 = scmp.eq.s32.totalorder %s32, 1
      %p264 = por %p262, %p263
      %p265 = scmp.ne.s32.totalorder %s257, %s260
      %p266 = scmp.eq.s32.totalorder %s32, 0
      %p267 = por %p265, %p266
      %p268 = scmp.ne.s32.totalorder %s257, %s260
      %p269 = scmp.eq.s32.totalorder %s37, 1
      %p270 = por %p268, %p269
      %p271 = scmp.ne.s32.totalorder %s260, %s261
      %p272 = scmp.eq.s32.totalorder %s37, 0
      %p273 = por %p271, %p272
      %p274 = scmp.ne.s32.totalorder %s260, %s261
      %p275 = scmp.eq.s32.totalorder %s38, 1
      %p276 = por %p274, %p275
      %p278 = scmp.ne.s32.totalorder %s261, %s277
      %p279 = scmp.eq.s32.totalorder %s38, 0
      %p280 = por %p278, %p279
      %s281 = ssub.s32 %s32, %s39
      %p282 = scmp.eq.s32.totalorder %s281, 0
      %s284 = sadd.s32 %s283, 1
      %s285 = scalar_select %p282, %s283, %s284
      %p288 = pneg %p282
      %p289 = scmp.eq.s32.totalorder %s32, 1
      %p290 = por %p288, %p289
      %p291 = scmp.ne.s32.totalorder %s283, %s286
      %p292 = scmp.eq.s32.totalorder %s32, 0
      %p293 = por %p291, %p292
      %p294 = scmp.ne.s32.totalorder %s283, %s286
      %p295 = scmp.eq.s32.totalorder %s37, 1
      %p296 = por %p294, %p295
      %p297 = scmp.ne.s32.totalorder %s286, %s287
      %p298 = scmp.eq.s32.totalorder %s37, 0
      %p299 = por %p297, %p298
      %p300 = scmp.ne.s32.totalorder %s286, %s287
      %p301 = scmp.eq.s32.totalorder %s38, 1
      %p302 = por %p300, %p301
      %p304 = scmp.ne.s32.totalorder %s287, %s303
      %p305 = scmp.eq.s32.totalorder %s38, 0
      %p306 = por %p304, %p305
      %s307 = ssub.s32 %s32, %s39
      %p308 = scmp.eq.s32.totalorder %s307, 0
      %s310 = sadd.s32 %s309, 1
      %s311 = scalar_select %p308, %s309, %s310
      %p314 = pneg %p308
      %p315 = scmp.eq.s32.totalorder %s32, 1
      %p316 = por %p314, %p315
      %p317 = scmp.ne.s32.totalorder %s309, %s312
      %p318 = scmp.eq.s32.totalorder %s32, 0
      %p319 = por %p317, %p318
      %p320 = scmp.ne.s32.totalorder %s309, %s312
      %p321 = scmp.eq.s32.totalorder %s37, 1
      %p322 = por %p320, %p321
      %p323 = scmp.ne.s32.totalorder %s312, %s313
      %p324 = scmp.eq.s32.totalorder %s37, 0
      %p325 = por %p323, %p324
      %p326 = scmp.ne.s32.totalorder %s312, %s313
      %p327 = scmp.eq.s32.totalorder %s38, 1
      %p328 = por %p326, %p327
      %p330 = scmp.ne.s32.totalorder %s313, %s329
      %p331 = scmp.eq.s32.totalorder %s38, 0
      %p332 = por %p330, %p331
      %s333 = ssub.s32 %s32, %s39
      %p334 = scmp.eq.s32.totalorder %s333, 0
      %s336 = sadd.s32 %s335, 1
      %s337 = scalar_select %p334, %s335, %s336
      %p340 = pneg %p334
      %p341 = scmp.eq.s32.totalorder %s32, 1
      %p342 = por %p340, %p341
      %p343 = scmp.ne.s32.totalorder %s335, %s338
      %p344 = scmp.eq.s32.totalorder %s32, 0
      %p345 = por %p343, %p344
      %p346 = scmp.ne.s32.totalorder %s335, %s338
      %p347 = scmp.eq.s32.totalorder %s37, 1
      %p348 = por %p346, %p347
      %p349 = scmp.ne.s32.totalorder %s338, %s339
      %p350 = scmp.eq.s32.totalorder %s37, 0
      %p351 = por %p349, %p350
      %p352 = scmp.ne.s32.totalorder %s338, %s339
      %p353 = scmp.eq.s32.totalorder %s38, 1
      %p354 = por %p352, %p353
      %p356 = scmp.ne.s32.totalorder %s339, %s355
      %p357 = scmp.eq.s32.totalorder %s38, 0
      %p358 = por %p356, %p357
      %s360 = sadd.s32 %s359, 1
      %p363 = scmp.eq.s32.totalorder %s32, 1
      %p364 = scmp.ne.s32.totalorder %s359, %s361
      %p365 = scmp.eq.s32.totalorder %s32, 0
      %p366 = por %p364, %p365
      %p367 = scmp.ne.s32.totalorder %s359, %s361
      %p368 = scmp.eq.s32.totalorder %s37, 1
      %p369 = por %p367, %p368
      %p370 = scmp.ne.s32.totalorder %s361, %s362
      %p371 = scmp.eq.s32.totalorder %s37, 0
      %p372 = por %p370, %p371
      %p373 = scmp.ne.s32.totalorder %s361, %s362
      %p374 = scmp.eq.s32.totalorder %s38, 1
      %p375 = por %p373, %p374
      %p377 = scmp.ne.s32.totalorder %s362, %s376
      %p378 = scmp.eq.s32.totalorder %s38, 0
      %p379 = por %p377, %p378
      %p380 = scmp.le.s32.totalorder 1, %s32
      %p381 = scmp.lt.s32.totalorder %s32, 3
      %p382 = pnand %p380, %p381
      %p383 = pneg %p382
      // Predicated region
      $region9: #{glyph_model_forward.1} parent=5 // pred_check
        _
      $region10: #{glyph_model_forward.1} parent=5 // pred_check_branch
        %385 = sbr.rel (%p382) target = $region12
      $region11: #{glyph_model_forward.1} parent=5 // pred_region
        %s386 = ssub.s32 %s32, 1
        // Predicated region
        $region13: #{glyph_model_forward.1} parent=11 // pred_check
          %p387 = pneg %p53
        $region14: #{glyph_model_forward.1} parent=11 // pred_check_branch
          %389 = sbr.rel (%p387) target = $region16
        $region15: #{glyph_model_forward.1} parent=11 // pred_region
          _
        $region16: #{glyph_model_forward.1} parent=11 // pred_fallthru
          _
        // Predicated region
        $region17: #{glyph_model_forward.1} parent=11 // pred_check
          %p390 = pneg %p74
        $region18: #{glyph_model_forward.1} parent=11 // pred_check_branch
          %392 = sbr.rel (%p390) target = $region20
        $region19: #{glyph_model_forward.1} parent=11 // pred_region
          _
        $region20: #{glyph_model_forward.1} parent=11 // pred_fallthru
          _
        // Predicated region
        $region21: #{glyph_model_forward.1} parent=11 // pred_check
          %p393 = pneg %p95
        $region22: #{glyph_model_forward.1} parent=11 // pred_check_branch
          %395 = sbr.rel (%p393) target = $region24
        $region23: #{glyph_model_forward.1} parent=11 // pred_region
          _
        $region24: #{glyph_model_forward.1} parent=11 // pred_fallthru
          _
        // Predicated region
        $region25: #{glyph_model_forward.1} parent=11 // pred_check
          %p396 = pneg %p116
        $region26: #{glyph_model_forward.1} parent=11 // pred_check_branch
          %398 = sbr.rel (%p396) target = $region28
        $region27: #{glyph_model_forward.1} parent=11 // pred_region
          _
        $region28: #{glyph_model_forward.1} parent=11 // pred_fallthru
          _
        // Predicated region
        $region29: #{glyph_model_forward.1} parent=11 // pred_check
          %p399 = pneg %p137
        $region30: #{glyph_model_forward.1} parent=11 // pred_check_branch
          %401 = sbr.rel (%p399) target = $region32
        $region31: #{glyph_model_forward.1} parent=11 // pred_region
          %s403 = ssub.s32 512, 512
          %404 = vsyncadd [#allocation4], %s403
          %s405 = sshll.u32 [#allocation3], 4
          %s406 = int_to_ptr.vmem [resolvable:$true] %s405
          %411 = dma.hbm_to_vmem [thread:$0]  %s4, 512, %s406, [#allocation4], 128, 128, 8
        $region32: #{glyph_model_forward.1} parent=11 // pred_fallthru
          _
        // Predicated region
        $region33: #{glyph_model_forward.1} parent=11 // pred_check
          %p412 = pneg %p158
        $region34: #{glyph_model_forward.1} parent=11 // pred_check_branch
          %414 = sbr.rel (%p412) target = $region36
        $region35: #{glyph_model_forward.1} parent=11 // pred_region
          _
        $region36: #{glyph_model_forward.1} parent=11 // pred_fallthru
          _
        // Predicated region
        $region37: #{glyph_model_forward.1} parent=11 // pred_check
          %p415 = pneg %p179
        $region38: #{glyph_model_forward.1} parent=11 // pred_check_branch
          %417 = sbr.rel (%p415) target = $region40
        $region39: #{glyph_model_forward.1} parent=11 // pred_region
          %s419 = ssub.s32 2048, 2048
          %420 = vsyncadd [#allocation7], %s419
          %s421 = sshll.u32 [#allocation6], 4
          %s422 = int_to_ptr.vmem [resolvable:$true] %s421
          %427 = dma.hbm_to_vmem [thread:$0]  %s6, 2048, %s422, [#allocation7], 256, 256, 16
        $region40: #{glyph_model_forward.1} parent=11 // pred_fallthru
          _
        // Predicated region
        $region41: #{glyph_model_forward.1} parent=11 // pred_check
          %p428 = pneg %p200
        $region42: #{glyph_model_forward.1} parent=11 // pred_check_branch
          %430 = sbr.rel (%p428) target = $region44
        $region43: #{glyph_model_forward.1} parent=11 // pred_region
          %s432 = ssub.s32 2048, 2048
          %433 = vsyncadd [#allocation7], %s432
          %s434 = sshll.u32 [#allocation8], 4
          %s435 = int_to_ptr.vmem [resolvable:$true] %s434
          %440 = dma.hbm_to_vmem [thread:$0]  %s7, 2048, %s435, [#allocation7], 64, 64, 4
        $region44: #{glyph_model_forward.1} parent=11 // pred_fallthru
          _
        // Predicated region
        $region45: #{glyph_model_forward.1} parent=11 // pred_check
          %p441 = pneg %p221
        $region46: #{glyph_model_forward.1} parent=11 // pred_check_branch
          %443 = sbr.rel (%p441) target = $region48
        $region47: #{glyph_model_forward.1} parent=11 // pred_region
          _
        $region48: #{glyph_model_forward.1} parent=11 // pred_fallthru
          _
      $region12: #{glyph_model_forward.1} parent=5 // pred_fallthru
        _
      %p444 = scmp.lt.s32.totalorder %s32, 2
      // Predicated region
      $region49: #{glyph_model_forward.1} parent=5 // pred_check
        %p445 = pneg %p444
      $region50: #{glyph_model_forward.1} parent=5 // pred_check_branch
        %447 = sbr.rel (%p445) target = $region52
      $region51: #{glyph_model_forward.1} parent=5 // pred_region
        // Predicated region
        $region53: #{glyph_model_forward.1} parent=51 // pred_check
          %p448 = pneg %p241
        $region54: #{glyph_model_forward.1} parent=51 // pred_check_branch
          %450 = sbr.rel (%p448) target = $region56
        $region55: #{glyph_model_forward.1} parent=51 // pred_region
          %s451 = sand.u32 %s32, 1
          %s452 = scalar_lea.sflag [#allocation10], %s451
          %s453 = sand.u32 %s231, 1
          %s454 = smul.addr %s453, 192
          %s455 = scalar_lea.vmem [#allocation9], %s454
          %s457 = ssub.s32 3072, 3072
          %458 = vsyncadd %s452, %s457
          %s459 = smul.addr %s32, 48
          %s460 = smul.addr %s459, 64
          %s461 = scalar_lea.hbm %s9, %s460
          %s462 = sshll.u32 %s455, 4
          %s463 = int_to_ptr.vmem [resolvable:$true] %s462
          %468 = dma.hbm_to_vmem [thread:$0]  %s461, 3072, %s463, %s452, 192, 192, 12
        $region56: #{glyph_model_forward.1} parent=51 // pred_fallthru
          _
        // Predicated region
        $region57: #{glyph_model_forward.1} parent=51 // pred_check
          %p469 = pneg %p267
        $region58: #{glyph_model_forward.1} parent=51 // pred_check_branch
          %471 = sbr.rel (%p469) target = $region60
        $region59: #{glyph_model_forward.1} parent=51 // pred_region
          %s472 = sand.u32 %s32, 1
          %s473 = scalar_lea.sflag [#allocation10], %s472
          %s474 = sand.u32 %s257, 1
          %s475 = smul.addr %s474, 64
          %s476 = scalar_lea.vmem [#allocation11], %s475
          %s478 = ssub.s32 1024, 1024
          %479 = vsyncadd %s473, %s478
          %s480 = smul.addr %s32, 16
          %s481 = smul.addr %s480, 64
          %s482 = scalar_lea.hbm %s10, %s481
          %s483 = sshll.u32 %s476, 4
          %s484 = int_to_ptr.vmem [resolvable:$true] %s483
          %489 = dma.hbm_to_vmem [thread:$0]  %s482, 1024, %s484, %s473, 64, 64, 4
        $region60: #{glyph_model_forward.1} parent=51 // pred_fallthru
          _
        // Predicated region
        $region61: #{glyph_model_forward.1} parent=51 // pred_check
          %p490 = pneg %p293
        $region62: #{glyph_model_forward.1} parent=51 // pred_check_branch
          %492 = sbr.rel (%p490) target = $region64
        $region63: #{glyph_model_forward.1} parent=51 // pred_region
          %s493 = sand.u32 %s32, 1
          %s494 = scalar_lea.sflag [#allocation13], %s493
          %s495 = sand.u32 %s283, 1
          %s496 = smul.addr %s495, 128
          %s497 = scalar_lea.vmem [#allocation12], %s496
          %s499 = ssub.s32 2048, 2048
          %500 = vsyncadd %s494, %s499
          %s501 = smul.addr %s32, 32
          %s502 = smul.addr %s501, 64
          %s503 = scalar_lea.hbm %s11, %s502
          %s504 = sshll.u32 %s497, 4
          %s505 = int_to_ptr.vmem [resolvable:$true] %s504
          %510 = dma.hbm_to_vmem [thread:$0]  %s503, 2048, %s505, %s494, 128, 128, 8
        $region64: #{glyph_model_forward.1} parent=51 // pred_fallthru
          _
        // Predicated region
        $region65: #{glyph_model_forward.1} parent=51 // pred_check
          %p511 = pneg %p319
        $region66: #{glyph_model_forward.1} parent=51 // pred_check_branch
          %513 = sbr.rel (%p511) target = $region68
        $region67: #{glyph_model_forward.1} parent=51 // pred_region
          %s514 = sand.u32 %s32, 1
          %s515 = scalar_lea.sflag [#allocation13], %s514
          %s516 = sand.u32 %s309, 1
          %s517 = smul.addr %s516, 128
          %s518 = scalar_lea.vmem [#allocation14], %s517
          %s520 = ssub.s32 2048, 2048
          %521 = vsyncadd %s515, %s520
          %s522 = smul.addr %s32, 32
          %s523 = smul.addr %s522, 64
          %s524 = scalar_lea.hbm %s12, %s523
          %s525 = sshll.u32 %s518, 4
          %s526 = int_to_ptr.vmem [resolvable:$true] %s525
          %531 = dma.hbm_to_vmem [thread:$0]  %s524, 2048, %s526, %s515, 64, 64, 4
        $region68: #{glyph_model_forward.1} parent=51 // pred_fallthru
          _
        // Predicated region
        $region69: #{glyph_model_forward.1} parent=51 // pred_check
          %p532 = pneg %p345
        $region70: #{glyph_model_forward.1} parent=51 // pred_check_branch
          %534 = sbr.rel (%p532) target = $region72
        $region71: #{glyph_model_forward.1} parent=51 // pred_region
          %s535 = sand.u32 %s335, 1
          %s536 = scalar_lea.sflag [#allocation16], %s535
          %s537 = sand.u32 %s335, 1
          %s538 = smul.addr %s537, 24
          %s539 = scalar_lea.vmem [#allocation15], %s538
          %s541 = ssub.s32 384, 384
          %542 = vsyncadd %s536, %s541
          %s543 = smul.addr %s32, 3
          %s544 = smul.addr %s543, 128
          %s545 = scalar_lea.hbm %s13, %s544
          %s547 = sshll.u32 %s539, 4
          %s548 = int_to_ptr.vmem [resolvable:$true] %s547
          %550 = dma.hbm_to_vmem [thread:$0]  %s545, 384, %s548, %s536
        $region72: #{glyph_model_forward.1} parent=51 // pred_fallthru
          _
      $region52: #{glyph_model_forward.1} parent=5 // pred_fallthru
        _
      %p551 = scmp.le.s32.totalorder 1, %s32
      %p552 = scmp.lt.s32.totalorder %s32, 3
      %p553 = pnand %p551, %p552
      %p554 = pneg %p553
      // Predicated region
      $region73: #{glyph_model_forward.1} parent=5 // pred_check
        _
      $region74: #{glyph_model_forward.1} parent=5 // pred_check_branch
        %556 = sbr.rel (%p553) target = $region76
      $region75: #{glyph_model_forward.1} parent=5 // pred_region
        %s557 = ssub.s32 %s32, 1
        // Predicated region
        $region77: #{glyph_model_forward.1} parent=75 // pred_check
          %p558 = pneg %p137
        $region78: #{glyph_model_forward.1} parent=75 // pred_check_branch
          %560 = sbr.rel (%p558) target = $region80
        $region79: #{glyph_model_forward.1} parent=75 // pred_region
          %561 = dma.done [#allocation4], 512
        $region80: #{glyph_model_forward.1} parent=75 // pred_fallthru
          _
        // Predicated region
        $region81: #{glyph_model_forward.1} parent=75 // pred_check
          %p562 = pneg %p179
        $region82: #{glyph_model_forward.1} parent=75 // pred_check_branch
          %564 = sbr.rel (%p562) target = $region84
        $region83: #{glyph_model_forward.1} parent=75 // pred_region
          %565 = dma.done [#allocation7], 2048
        $region84: #{glyph_model_forward.1} parent=75 // pred_fallthru
          _
        // Predicated region
        $region85: #{glyph_model_forward.1} parent=75 // pred_check
          %p566 = pneg %p200
        $region86: #{glyph_model_forward.1} parent=75 // pred_check_branch
          %568 = sbr.rel (%p566) target = $region88
        $region87: #{glyph_model_forward.1} parent=75 // pred_region
          %569 = dma.done [#allocation7], 2048
        $region88: #{glyph_model_forward.1} parent=75 // pred_fallthru
          _
        %s570 = sand.u32 %s37, 1
        %s571 = scalar_lea.sflag [#allocation10], %s570
        %s572 = sand.u32 %s234, 1
        %s573 = smul.addr %s572, 192
        %s574 = scalar_lea.vmem [#allocation9], %s573
        // Predicated region
        $region89: #{glyph_model_forward.1} parent=75 // pred_check
          %p575 = pneg %p247
        $region90: #{glyph_model_forward.1} parent=75 // pred_check_branch
          %577 = sbr.rel (%p575) target = $region92
        $region91: #{glyph_model_forward.1} parent=75 // pred_region
          %578 = dma.done %s571, 3072
        $region92: #{glyph_model_forward.1} parent=75 // pred_fallthru
          _
        %s579 = sand.u32 %s37, 1
        %s580 = scalar_lea.sflag [#allocation10], %s579
        %s581 = sand.u32 %s260, 1
        %s582 = smul.addr %s581, 64
        %s583 = scalar_lea.vmem [#allocation11], %s582
        // Predicated region
        $region93: #{glyph_model_forward.1} parent=75 // pred_check
          %p584 = pneg %p273
        $region94: #{glyph_model_forward.1} parent=75 // pred_check_branch
          %586 = sbr.rel (%p584) target = $region96
        $region95: #{glyph_model_forward.1} parent=75 // pred_region
          %587 = dma.done %s580, 1024
        $region96: #{glyph_model_forward.1} parent=75 // pred_fallthru
          _
        %s588 = sand.u32 %s37, 1
        %s589 = scalar_lea.sflag [#allocation13], %s588
        %s590 = sand.u32 %s286, 1
        %s591 = smul.addr %s590, 128
        %s592 = scalar_lea.vmem [#allocation12], %s591
        // Predicated region
        $region97: #{glyph_model_forward.1} parent=75 // pred_check
          %p593 = pneg %p299
        $region98: #{glyph_model_forward.1} parent=75 // pred_check_branch
          %595 = sbr.rel (%p593) target = $region100
        $region99: #{glyph_model_forward.1} parent=75 // pred_region
          %596 = dma.done %s589, 2048
        $region100: #{glyph_model_forward.1} parent=75 // pred_fallthru
          _
        %s597 = sand.u32 %s37, 1
        %s598 = scalar_lea.sflag [#allocation13], %s597
        %s599 = sand.u32 %s312, 1
        %s600 = smul.addr %s599, 128
        %s601 = scalar_lea.vmem [#allocation14], %s600
        // Predicated region
        $region101: #{glyph_model_forward.1} parent=75 // pred_check
          %p602 = pneg %p325
        $region102: #{glyph_model_forward.1} parent=75 // pred_check_branch
          %604 = sbr.rel (%p602) target = $region104
        $region103: #{glyph_model_forward.1} parent=75 // pred_region
          %605 = dma.done %s598, 2048
        $region104: #{glyph_model_forward.1} parent=75 // pred_fallthru
          _
        %s606 = sand.u32 %s338, 1
        %s607 = scalar_lea.sflag [#allocation16], %s606
        %s608 = sand.u32 %s338, 1
        %s609 = smul.addr %s608, 24
        %s610 = scalar_lea.vmem [#allocation15], %s609
        // Predicated region
        $region105: #{glyph_model_forward.1} parent=75 // pred_check
          %p611 = pneg %p351
        $region106: #{glyph_model_forward.1} parent=75 // pred_check_branch
          %613 = sbr.rel (%p611) target = $region108
        $region107: #{glyph_model_forward.1} parent=75 // pred_region
          %614 = dma.done %s607, 384
        $region108: #{glyph_model_forward.1} parent=75 // pred_fallthru
          _
        %p615 = pneg %p53
        %p616 = pneg %p50
        %p617 = pneg %p74
        %p618 = pneg %p71
        %p619 = pneg %p95
        %p620 = pneg %p92
        %p621 = pneg %p116
        %p622 = pneg %p113
        %p623 = pneg %p137
        %p624 = pneg %p134
        %p625 = pneg %p158
        %p626 = pneg %p155
        %p627 = pneg %p179
        %p628 = pneg %p176
        %p629 = pneg %p200
        %p630 = pneg %p197
        %p631 = pneg %p221
        %p632 = pneg %p218
        %s633 = sand.u32 %s37, 1
        %s634 = scalar_lea.sflag [#allocation10], %s633
        %s635 = sand.u32 %s234, 1
        %s636 = smul.addr %s635, 192
        %s637 = scalar_lea.vmem [#allocation9], %s636
        %p638 = pneg %p247
        %p639 = pneg %p244
        %s640 = sand.u32 %s37, 1
        %s641 = scalar_lea.sflag [#allocation10], %s640
        %s642 = sand.u32 %s260, 1
        %s643 = smul.addr %s642, 64
        %s644 = scalar_lea.vmem [#allocation11], %s643
        %p645 = pneg %p273
        %p646 = pneg %p270
        %s647 = sand.u32 %s37, 1
        %s648 = scalar_lea.sflag [#allocation13], %s647
        %s649 = sand.u32 %s286, 1
        %s650 = smul.addr %s649, 128
        %s651 = scalar_lea.vmem [#allocation12], %s650
        %p652 = pneg %p299
        %p653 = pneg %p296
        %s654 = sand.u32 %s37, 1
        %s655 = scalar_lea.sflag [#allocation13], %s654
        %s656 = sand.u32 %s312, 1
        %s657 = smul.addr %s656, 128
        %s658 = scalar_lea.vmem [#allocation14], %s657
        %p659 = pneg %p325
        %p660 = pneg %p322
        %s661 = sand.u32 %s338, 1
        %s662 = scalar_lea.sflag [#allocation16], %s661
        %s663 = sand.u32 %s338, 1
        %s664 = smul.addr %s663, 24
        %s665 = scalar_lea.vmem [#allocation15], %s664
        %p666 = pneg %p351
        %p667 = pneg %p348
        %p668 = pneg %p372
        %p669 = pneg %p369
        %p671 = scmp.eq.s32.totalorder %s37, 0
        // Predicated region
        $region109: #{glyph_model_forward.1} parent=75 // pred_check
          %p672 = pneg %p671
        $region110: #{glyph_model_forward.1} parent=75 // pred_check_branch
          %674 = sbr.rel (%p672) target = $region112
        $region111: #{glyph_model_forward.1} parent=75 // pred_region
          %v675 = vld [vmem:[%s0] sm:$0xff]
          %v676 = vld [vmem:[%s0 + $0x8] sm:$0xff]
          %v677 = vld [vmem:[%s1] sm:$0xff]
          %v678 = vld [vmem:[%s1 + $0x8] sm:$0xff]
          %v679 = vld [vmem:[%s2] sm:$0xff]
          %v680 = vld [vmem:[%s2 + $0x8] sm:$0xff]
          %v681 = vlaneseq
          %v682 = vand.u32 %v681, 127
          %683 = vset.pattern.permute.xlu0 0
          %684 = vperm.xlu0 %683, %v675
          %v685 = vpop.permute.xlu0 %684
          %686 = vset.pattern.permute.xlu0 0
          %687 = vperm.xlu0 %686, %v676
          %v688 = vpop.permute.xlu0 %687
          %vm689 = vcmp.eq.s32.totalorder %v682, %v685
          %vm690 = vcmp.eq.s32.totalorder %v682, %v688
          %v691 = vsel %vm689, 1, 0
          %v692 = vsel %vm690, 1, 0
          %v693 = vcvt.s32.f32 %v691
          %v694 = vcvt.s32.f32 %v692
          %695 = vset.pattern.permute.xlu0 0
          %696 = vperm.xlu0 %695, %v677
          %v697 = vpop.permute.xlu0 %696
          %698 = vset.pattern.permute.xlu0 0
          %699 = vperm.xlu0 %698, %v678
          %v700 = vpop.permute.xlu0 %699
          %vm701 = vcmp.eq.s32.totalorder %v682, %v697
          %vm702 = vcmp.eq.s32.totalorder %v682, %v700
          %v703 = vsel %vm701, 1, 0
          %v704 = vsel %vm702, 1, 0
          %v705 = vcvt.s32.f32 %v703
          %v706 = vcvt.s32.f32 %v704
          %v707 = vld [vmem:[%s3] sm:$0xff]
          %v708 = vld [vmem:[%s3 + $0x8] sm:$0xff]
          %v709 = vld [vmem:[%s3 + $0x10] sm:$0xff]
          %v710 = vld [vmem:[%s3 + $0x18] sm:$0xff]
          %v711 = vld [vmem:[%s3 + $0x20] sm:$0xff]
          %v712 = vld [vmem:[%s3 + $0x28] sm:$0xff]
          %v713 = vld [vmem:[%s3 + $0x30] sm:$0xff]
          %v714 = vld [vmem:[%s3 + $0x38] sm:$0xff]
          %v715 = vld [vmem:[#allocation3] sm:$0xff]
          %v716 = vld [vmem:[#allocation3 + $0x8] sm:$0xff]
          %v717 = vld [vmem:[#allocation3 + $0x10] sm:$0xff]
          %v718 = vld [vmem:[#allocation3 + $0x18] sm:$0xff]
          %vm719 = vcmask 261120
          %v721 = vsel %vm719, %v705, 0
          %v724 = vsel %vm719, %v706, 0
          %726 = vmatprep.subr.mxu0 0.0
          %727 = vmatpush1.msra.mxu0 0.0
          %728 = vmatprep.subr.mxu0 0.0
          %729 = vmatpush1.msra.mxu0 0.0
          %730 = vmatprep.subr.mxu0 0.0
          %731 = vmatpush1.msra.mxu0 0.0
          %732 = vmatprep.subr.mxu0 0.0
          %733 = vmatpush1.msra.mxu0 0.0
          %734 = vmatprep.subr.mxu0 0.0
          %735 = vmatpush1.msra.mxu0 0.0
          %736 = vmatprep.subr.mxu0 0.0
          %737 = vmatpush1.msra.mxu0 0.0
          %738 = vmatprep.subr.mxu0 0.0
          %739 = vmatpush1.msra.mxu0 0.0
          %740 = vmatprep.subr.mxu0 0.0
          %741 = vmatpush1.msra.mxu0 0.0
          %742 = vmatprep.subr.mxu0 0.0
          %743 = vmatpush1.msra.mxu0 0.0
          %744 = vmatprep.subr.mxu0 0.0
          %745 = vmatpush1.msra.mxu0 0.0
          %746 = vmatprep.subr.mxu0 0.0
          %747 = vmatpush1.msra.mxu0 0.0
          %748 = vmatprep.subr.mxu0 0.0
          %749 = vmatpush1.msra.mxu0 0.0
          %750 = vmatprep.subr.mxu0 0.0
          %751 = vmatpush1.msra.mxu0 %v718
          %752 = vmatprep.subr.mxu0 0.0
          %753 = vmatpush1.msra.mxu0 %v717
          %754 = vmatprep.subr.mxu0 0.0
          %755 = vmatpush1.msra.mxu0 %v716
          %756 = vmatprep.subr.mxu0 0.0
          %757 = vmatpush1.msra.mxu0 %v715
          %758 = vmatprep.subr.mxu0 0.0
          %759 = vmatpush2.msra.mxu0 0.0
          %760 = vmatprep.subr.mxu0 0.0
          %761 = vmatpush2.msra.mxu0 0.0
          %762 = vmatprep.subr.mxu0 0.0
          %763 = vmatpush2.msra.mxu0 0.0
          %764 = vmatprep.subr.mxu0 0.0
          %765 = vmatpush2.msra.mxu0 0.0
          %766 = vmatprep.subr.mxu0 0.0
          %767 = vmatpush2.msra.mxu0 0.0
          %768 = vmatprep.subr.mxu0 0.0
          %769 = vmatpush2.msra.mxu0 0.0
          %770 = vmatprep.subr.mxu0 0.0
          %771 = vmatpush2.msra.mxu0 0.0
          %772 = vmatprep.subr.mxu0 0.0
          %773 = vmatpush2.msra.mxu0 0.0
          %774 = vmatprep.subr.mxu0 0.0
          %775 = vmatpush2.msra.mxu0 0.0
          %776 = vmatprep.subr.mxu0 0.0
          %777 = vmatpush2.msra.mxu0 0.0
          %778 = vmatprep.subr.mxu0 0.0
          %779 = vmatpush2.msra.mxu0 0.0
          %780 = vmatprep.subr.mxu0 0.0
          %781 = vmatpush2.msra.mxu0 0.0
          %782 = vmatprep.subr.mxu0 0.0
          %783 = vmatpush2.msra.mxu0 0.0
          %784 = vmatprep.subr.mxu0 0.0
          %785 = vmatpush2.msra.mxu0 0.0
          %786 = vmatprep.subr.mxu0 0.0
          %787 = vmatpush2.msra.mxu0 0.0
          %788 = vmatprep.subr.mxu0 0.0
          %789 = vmatpush2.msra.mxu0 0.0
          %790 = vmatprep.mubr.f32.mxu0 0.0
          %791 = vmatmul.mubr.f32.gmra.mxu0 %v721
          %v792 = vpop.f32.mrf.mxu0
          %v793 = vadd.f32 0.0, %v792
          %v794 = vpop.f32.mrf.mxu0
          %795 = vmatprep.mubr.f32.mxu0 0.0
          %796 = vmatmul.mubr.f32.gmra.mxu0 %v724
          %v797 = vpop.f32.mrf.mxu0
          %v798 = vadd.f32 0.0, %v797
          %v799 = vpop.f32.mrf.mxu0
          %800 = vdwg.mxu0
          %vm801 = vcmp.eq.s32.totalorder %v679, 0
          %vm802 = vcmp.eq.s32.totalorder %v680, 0
          %v803 = vld [vmem:[%s5] sm:$0x1]
          %v804 = vld [vmem:[%s5 + $0x1] sm:$0x1]
          %v805 = vsel %vm801, 1, 0
          %v806 = vsel %vm802, 1, 0
          %807 = vset.pattern.permute.xlu0 0
          %808 = vperm.xlu0 %807, %v805
          %v809 = vpop.permute.xlu0 %808
          %810 = vset.pattern.permute.xlu0 0
          %811 = vperm.xlu0 %810, %v806
          %v812 = vpop.permute.xlu0 %811
          %vm813 = vcmp.eq.s32.totalorder %v809, 1
          %vm814 = vcmp.eq.s32.totalorder %v812, 1
          %v815 = vlaneseq
          %v816 = vshrl.u32 %v815, 7
          %v817 = vsub.s32 0, %v816
          %v818 = vrot.slane %v803, %v817
          %v819 = vlaneseq
          %v820 = vshrl.u32 %v819, 7
          %v821 = vsub.s32 0, %v820
          %v822 = vrot.slane %v804, %v821
          %v823 = vsel %vm813, %v818, %v822
          %v824 = vsel %vm814, %v818, %v822
          %vm825 = vcmask 523264
          %v827 = vsel %vm825, %v693, 0
          %v830 = vsel %vm825, %v694, 0
          %832 = vmatprep.subr.mxu0 0.0
          %833 = vmatpush1.msra.mxu0 0.0
          %834 = vmatprep.subr.mxu0 0.0
          %835 = vmatpush1.msra.mxu0 0.0
          %836 = vmatprep.subr.mxu0 0.0
          %837 = vmatpush1.msra.mxu0 0.0
          %838 = vmatprep.subr.mxu0 0.0
          %839 = vmatpush1.msra.mxu0 0.0
          %840 = vmatprep.subr.mxu0 0.0
          %841 = vmatpush1.msra.mxu0 0.0
          %842 = vmatprep.subr.mxu0 0.0
          %843 = vmatpush1.msra.mxu0 0.0
          %844 = vmatprep.subr.mxu0 0.0
          %845 = vmatpush1.msra.mxu0 0.0
          %846 = vmatprep.subr.mxu0 0.0
          %847 = vmatpush1.msra.mxu0 0.0
          %848 = vmatprep.subr.mxu0 0.0
          %849 = vmatpush1.msra.mxu0 %v714
          %850 = vmatprep.subr.mxu0 0.0
          %851 = vmatpush1.msra.mxu0 %v713
          %852 = vmatprep.subr.mxu0 0.0
          %853 = vmatpush1.msra.mxu0 %v712
          %854 = vmatprep.subr.mxu0 0.0
          %855 = vmatpush1.msra.mxu0 %v711
          %856 = vmatprep.subr.mxu0 0.0
          %857 = vmatpush1.msra.mxu0 %v710
          %858 = vmatprep.subr.mxu0 0.0
          %859 = vmatpush1.msra.mxu0 %v709
          %860 = vmatprep.subr.mxu0 0.0
          %861 = vmatpush1.msra.mxu0 %v708
          %862 = vmatprep.subr.mxu0 0.0
          %863 = vmatpush1.msra.mxu0 %v707
          %864 = vmatprep.subr.mxu0 0.0
          %865 = vmatpush2.msra.mxu0 0.0
          %866 = vmatprep.subr.mxu0 0.0
          %867 = vmatpush2.msra.mxu0 0.0
          %868 = vmatprep.subr.mxu0 0.0
          %869 = vmatpush2.msra.mxu0 0.0
          %870 = vmatprep.subr.mxu0 0.0
          %871 = vmatpush2.msra.mxu0 0.0
          %872 = vmatprep.subr.mxu0 0.0
          %873 = vmatpush2.msra.mxu0 0.0
          %874 = vmatprep.subr.mxu0 0.0
          %875 = vmatpush2.msra.mxu0 0.0
          %876 = vmatprep.subr.mxu0 0.0
          %877 = vmatpush2.msra.mxu0 0.0
          %878 = vmatprep.subr.mxu0 0.0
          %879 = vmatpush2.msra.mxu0 0.0
          %880 = vmatprep.subr.mxu0 0.0
          %881 = vmatpush2.msra.mxu0 0.0
          %882 = vmatprep.subr.mxu0 0.0
          %883 = vmatpush2.msra.mxu0 0.0
          %884 = vmatprep.subr.mxu0 0.0
          %885 = vmatpush2.msra.mxu0 0.0
          %886 = vmatprep.subr.mxu0 0.0
          %887 = vmatpush2.msra.mxu0 0.0
          %888 = vmatprep.subr.mxu0 0.0
          %889 = vmatpush2.msra.mxu0 0.0
          %890 = vmatprep.subr.mxu0 0.0
          %891 = vmatpush2.msra.mxu0 0.0
          %892 = vmatprep.subr.mxu0 0.0
          %893 = vmatpush2.msra.mxu0 0.0
          %894 = vmatprep.subr.mxu0 0.0
          %895 = vmatpush2.msra.mxu0 0.0
          %896 = vmatprep.mubr.f32.mxu0 0.0
          %897 = vmatmul.mubr.f32.gmra.mxu0 %v827
          %v898 = vpop.f32.mrf.mxu0
          %v899 = vadd.f32 %v793, %v898
          %v900 = vpop.f32.mrf.mxu0
          %901 = vmatprep.mubr.f32.mxu0 0.0
          %902 = vmatmul.mubr.f32.gmra.mxu0 %v830
          %v903 = vpop.f32.mrf.mxu0
          %v904 = vadd.f32 %v798, %v903
          %v905 = vpop.f32.mrf.mxu0
          %906 = vdwg.mxu0
          %v907 = vadd.f32 %v899, %v823
          %v908 = vadd.f32 %v904, %v824
          %v909 = vld [vmem:[%s8] sm:$0x1]
          %v910 = vld [vmem:[%s8 + $0x1] sm:$0x1]
          %911 = vadd.xlane.f32.xlu0 %v907
          %v912 = vpop.xlane.xlu0 %911
          %913 = vadd.xlane.f32.xlu0 %v908
          %v914 = vpop.xlane.xlu0 %913
          %v915 = vrcp.pop 128.0
          %v916 = vmul.f32 %v912, %v915
          %v917 = vmul.f32 %v914, %v915
          %v918 = vsub.f32 %v907, %v916
          %v919 = vsub.f32 %v908, %v917
          %v920 = vmul.f32 %v918, %v918
          %v921 = vmul.f32 %v919, %v919
          %922 = vadd.xlane.f32.xlu0 %v920
          %v923 = vpop.xlane.xlu0 %922
          %924 = vadd.xlane.f32.xlu0 %v921
          %v925 = vpop.xlane.xlu0 %924
          %v926 = vmul.f32 %v923, %v915
          %v927 = vmul.f32 %v925, %v915
          %v928 = vadd.f32 %v926, 1e-12
          %v929 = vadd.f32 %v927, 1e-12
          %v930 = vrsqrt.pop %v928
          %v931 = vrsqrt.pop %v929
          %v932 = vmul.f32 %v918, %v930
          %v933 = vmul.f32 %v919, %v931
          %v934 = vlaneseq
          %v935 = vshrl.u32 %v934, 7
          %v936 = vsub.s32 0, %v935
          %v937 = vrot.slane %v909, %v936
          %v938 = vmul.f32 %v932, %v937
          %v939 = vmul.f32 %v933, %v937
          %v940 = vlaneseq
          %v941 = vshrl.u32 %v940, 7
          %v942 = vsub.s32 0, %v941
          %v943 = vrot.slane %v910, %v942
          %v944 = vadd.f32 %v938, %v943
          %v945 = vadd.f32 %v939, %v943
          %v946 = vld [vmem:[#allocation6] sm:$0xff]
          %v947 = vld [vmem:[#allocation6 + $0x8] sm:$0xff]
          %v948 = vld [vmem:[#allocation6 + $0x10] sm:$0xff]
          %v949 = vld [vmem:[#allocation6 + $0x18] sm:$0xff]
          %v950 = vld [vmem:[#allocation6 + $0x20] sm:$0xff]
          %v951 = vld [vmem:[#allocation6 + $0x28] sm:$0xff]
          %v952 = vld [vmem:[#allocation6 + $0x30] sm:$0xff]
          %v953 = vld [vmem:[#allocation6 + $0x38] sm:$0xff]
          %v954 = vld [vmem:[#allocation6 + $0x40] sm:$0xff]
          %v955 = vld [vmem:[#allocation6 + $0x48] sm:$0xff]
          %v956 = vld [vmem:[#allocation6 + $0x50] sm:$0xff]
          %v957 = vld [vmem:[#allocation6 + $0x58] sm:$0xff]
          %v958 = vld [vmem:[#allocation6 + $0x60] sm:$0xff]
          %v959 = vld [vmem:[#allocation6 + $0x68] sm:$0xff]
          %v960 = vld [vmem:[#allocation6 + $0x70] sm:$0xff]
          %v961 = vld [vmem:[#allocation6 + $0x78] sm:$0xff]
          %962 = vmatprep.subr.mxu0 0.0
          %963 = vmatpush1.msra.mxu0 0.0
          %964 = vmatprep.subr.mxu0 0.0
          %965 = vmatpush1.msra.mxu0 0.0
          %966 = vmatprep.subr.mxu0 0.0
          %967 = vmatpush1.msra.mxu0 0.0
          %968 = vmatprep.subr.mxu0 0.0
          %969 = vmatpush1.msra.mxu0 0.0
          %970 = vmatprep.subr.mxu0 0.0
          %971 = vmatpush1.msra.mxu0 0.0
          %972 = vmatprep.subr.mxu0 0.0
          %973 = vmatpush1.msra.mxu0 0.0
          %974 = vmatprep.subr.mxu0 0.0
          %975 = vmatpush1.msra.mxu0 0.0
          %976 = vmatprep.subr.mxu0 0.0
          %977 = vmatpush1.msra.mxu0 0.0
          %978 = vmatprep.subr.mxu0 %v961
          %979 = vmatpush1.msra.mxu0 %v960
          %980 = vmatprep.subr.mxu0 %v959
          %981 = vmatpush1.msra.mxu0 %v958
          %982 = vmatprep.subr.mxu0 %v957
          %983 = vmatpush1.msra.mxu0 %v956
          %984 = vmatprep.subr.mxu0 %v955
          %985 = vmatpush1.msra.mxu0 %v954
          %986 = vmatprep.subr.mxu0 %v953
          %987 = vmatpush1.msra.mxu0 %v952
          %988 = vmatprep.subr.mxu0 %v951
          %989 = vmatpush1.msra.mxu0 %v950
          %990 = vmatprep.subr.mxu0 %v949
          %991 = vmatpush1.msra.mxu0 %v948
          %992 = vmatprep.subr.mxu0 %v947
          %993 = vmatpush1.msra.mxu0 %v946
          %994 = vmatprep.subr.mxu0 0.0
          %995 = vmatpush2.msra.mxu0 0.0
          %996 = vmatprep.subr.mxu0 0.0
          %997 = vmatpush2.msra.mxu0 0.0
          %998 = vmatprep.subr.mxu0 0.0
          %999 = vmatpush2.msra.mxu0 0.0
          %1000 = vmatprep.subr.mxu0 0.0
          %1001 = vmatpush2.msra.mxu0 0.0
          %1002 = vmatprep.subr.mxu0 0.0
          %1003 = vmatpush2.msra.mxu0 0.0
          %1004 = vmatprep.subr.mxu0 0.0
          %1005 = vmatpush2.msra.mxu0 0.0
          %1006 = vmatprep.subr.mxu0 0.0
          %1007 = vmatpush2.msra.mxu0 0.0
          %1008 = vmatprep.subr.mxu0 0.0
          %1009 = vmatpush2.msra.mxu0 0.0
          %1010 = vmatprep.subr.mxu0 0.0
          %1011 = vmatpush2.msra.mxu0 0.0
          %1012 = vmatprep.subr.mxu0 0.0
          %1013 = vmatpush2.msra.mxu0 0.0
          %1014 = vmatprep.subr.mxu0 0.0
          %1015 = vmatpush2.msra.mxu0 0.0
          %1016 = vmatprep.subr.mxu0 0.0
          %1017 = vmatpush2.msra.mxu0 0.0
          %1018 = vmatprep.subr.mxu0 0.0
          %1019 = vmatpush2.msra.mxu0 0.0
          %1020 = vmatprep.subr.mxu0 0.0
          %1021 = vmatpush2.msra.mxu0 0.0
          %1022 = vmatprep.subr.mxu0 0.0
          %1023 = vmatpush2.msra.mxu0 0.0
          %1024 = vmatprep.subr.mxu0 0.0
          %1025 = vmatpush2.msra.mxu0 0.0
          %1026 = vmatprep.mubr.f32.mxu0 0.0
          %1027 = vmatmul.mubr.f32.gmra.mxu0 %v827
          %v1028 = vpop.f32.mrf.mxu0
          %v1029 = vadd.f32 0.0, %v1028
          %v1030 = vpop.f32.mrf.mxu0
          %v1031 = vadd.f32 0.0, %v1030
          %1032 = vmatprep.mubr.f32.mxu0 0.0
          %1033 = vmatmul.mubr.f32.gmra.mxu0 %v830
          %v1034 = vpop.f32.mrf.mxu0
          %v1035 = vadd.f32 0.0, %v1034
          %v1036 = vpop.f32.mrf.mxu0
          %v1037 = vadd.f32 0.0, %v1036
          %1038 = vdwg.mxu0
          %v1039 = vpack.c.bf16 %v1035, %v1029
          %v1040 = vpack.c.bf16 %v1037, %v1031
          %v1041 = vld [vmem:[#allocation8] sm:$0xf]
          %v1042 = vld [vmem:[#allocation8 + $0x4] sm:$0xf]
          %v1043 = vld [vmem:[#allocation8 + $0x8] sm:$0xf]
          %v1044 = vld [vmem:[#allocation8 + $0xc] sm:$0xf]
          %v1045 = vld [vmem:[#allocation8 + $0x10] sm:$0xf]
          %v1046 = vld [vmem:[#allocation8 + $0x14] sm:$0xf]
          %v1047 = vld [vmem:[#allocation8 + $0x18] sm:$0xf]
          %v1048 = vld [vmem:[#allocation8 + $0x1c] sm:$0xf]
          %v1049 = vld [vmem:[#allocation8 + $0x20] sm:$0xf]
          %v1050 = vld [vmem:[#allocation8 + $0x24] sm:$0xf]
          %v1051 = vld [vmem:[#allocation8 + $0x28] sm:$0xf]
          %v1052 = vld [vmem:[#allocation8 + $0x2c] sm:$0xf]
          %v1053 = vld [vmem:[#allocation8 + $0x30] sm:$0xf]
          %v1054 = vld [vmem:[#allocation8 + $0x34] sm:$0xf]
          %v1055 = vld [vmem:[#allocation8 + $0x38] sm:$0xf]
          %v1056 = vld [vmem:[#allocation8 + $0x3c] sm:$0xf]
          %v1057 = vld [vmem:[#allocation8 + $0x40] sm:$0xf]
          %v1058 = vld [vmem:[#allocation8 + $0x44] sm:$0xf]
          %v1059 = vld [vmem:[#allocation8 + $0x48] sm:$0xf]
          %v1060 = vld [vmem:[#allocation8 + $0x4c] sm:$0xf]
          %v1061 = vld [vmem:[#allocation8 + $0x50] sm:$0xf]
          %v1062 = vld [vmem:[#allocation8 + $0x54] sm:$0xf]
          %v1063 = vld [vmem:[#allocation8 + $0x58] sm:$0xf]
          %v1064 = vld [vmem:[#allocation8 + $0x5c] sm:$0xf]
          %v1065 = vld [vmem:[#allocation8 + $0x60] sm:$0xf]
          %v1066 = vld [vmem:[#allocation8 + $0x64] sm:$0xf]
          %v1067 = vld [vmem:[#allocation8 + $0x68] sm:$0xf]
          %v1068 = vld [vmem:[#allocation8 + $0x6c] sm:$0xf]
          %v1069 = vld [vmem:[#allocation8 + $0x70] sm:$0xf]
          %v1070 = vld [vmem:[#allocation8 + $0x74] sm:$0xf]
          %v1071 = vld [vmem:[#allocation8 + $0x78] sm:$0xf]
          %v1072 = vld [vmem:[#allocation8 + $0x7c] sm:$0xf]
          %v1073 = vld [vmem:[%s8 + $0x2] sm:$0x1]
          %v1074 = vlaneseq
          %v1075 = vshrl.u32 %v1074, 7
          %v1076 = vsub.s32 0, %v1075
          %v1077 = vrot.slane %v1073, %v1076
          %v1110 = vunpack.c.l.b16 %v1041
          %v1111 = vunpack.c.l.b16 %v1042
          %v1112 = vunpack.c.l.b16 %v1043
          %v1113 = vunpack.c.l.b16 %v1044
          %v1114 = vunpack.c.l.b16 %v1045
          %v1115 = vunpack.c.l.b16 %v1046
          %v1116 = vunpack.c.l.b16 %v1047
          %v1117 = vunpack.c.l.b16 %v1048
          %v1118 = vunpack.c.l.b16 %v1049
          %v1119 = vunpack.c.l.b16 %v1050
          %v1120 = vunpack.c.l.b16 %v1051
          %v1121 = vunpack.c.l.b16 %v1052
          %v1122 = vunpack.c.l.b16 %v1053
          %v1123 = vunpack.c.l.b16 %v1054
          %v1124 = vunpack.c.l.b16 %v1055
          %v1125 = vunpack.c.l.b16 %v1056
          %v1126 = vunpack.c.l.b16 %v1057
          %v1127 = vunpack.c.l.b16 %v1058
          %v1128 = vunpack.c.l.b16 %v1059
          %v1129 = vunpack.c.l.b16 %v1060
          %v1130 = vunpack.c.l.b16 %v1061
          %v1131 = vunpack.c.l.b16 %v1062
          %v1132 = vunpack.c.l.b16 %v1063
          %v1133 = vunpack.c.l.b16 %v1064
          %v1134 = vunpack.c.l.b16 %v1065
          %v1135 = vunpack.c.l.b16 %v1066
          %v1136 = vunpack.c.l.b16 %v1067
          %v1137 = vunpack.c.l.b16 %v1068
          %v1138 = vunpack.c.l.b16 %v1069
          %v1139 = vunpack.c.l.b16 %v1070
          %v1140 = vunpack.c.l.b16 %v1071
          %v1141 = vunpack.c.l.b16 %v1072
          %v1142 = vpack.c.b16 %v1111, %v1110
          %v1143 = vpack.c.b16 %v1113, %v1112
          %v1144 = vpack.c.b16 %v1115, %v1114
          %v1145 = vpack.c.b16 %v1117, %v1116
          %v1146 = vpack.c.b16 %v1119, %v1118
          %v1147 = vpack.c.b16 %v1121, %v1120
          %v1148 = vpack.c.b16 %v1123, %v1122
          %v1149 = vpack.c.b16 %v1125, %v1124
          %v1150 = vpack.c.b16 %v1127, %v1126
          %v1151 = vpack.c.b16 %v1129, %v1128
          %v1152 = vpack.c.b16 %v1131, %v1130
          %v1153 = vpack.c.b16 %v1133, %v1132
          %v1154 = vpack.c.b16 %v1135, %v1134
          %v1155 = vpack.c.b16 %v1137, %v1136
          %v1156 = vpack.c.b16 %v1139, %v1138
          %v1157 = vpack.c.b16 %v1141, %v1140
          %1174 = vmatprep.subr.bf16.mxu0 0
          %1175 = vmatpush1.bf16.msra.mxu0 %v1149
          %1176 = vmatprep.subr.bf16.mxu0 0
          %1177 = vmatpush1.bf16.msra.mxu0 %v1148
          %1178 = vmatprep.subr.bf16.mxu0 0
          %1179 = vmatpush1.bf16.msra.mxu0 %v1147
          %1180 = vmatprep.subr.bf16.mxu0 0
          %1181 = vmatpush1.bf16.msra.mxu0 %v1146
          %1182 = vmatprep.subr.bf16.mxu0 0
          %1183 = vmatpush1.bf16.msra.mxu0 %v1145
          %1184 = vmatprep.subr.bf16.mxu0 0
          %1185 = vmatpush1.bf16.msra.mxu0 %v1144
          %1186 = vmatprep.subr.bf16.mxu0 0
          %1187 = vmatpush1.bf16.msra.mxu0 %v1143
          %1188 = vmatprep.subr.bf16.mxu0 0
          %1189 = vmatpush1.bf16.msra.mxu0 %v1142
          %1190 = vmatprep.subr.bf16.mxu0 0
          %1191 = vmatpush2.bf16.msra.mxu0 %v1157
          %1192 = vmatprep.subr.bf16.mxu0 0
          %1193 = vmatpush2.bf16.msra.mxu0 %v1156
          %1194 = vmatprep.subr.bf16.mxu0 0
          %1195 = vmatpush2.bf16.msra.mxu0 %v1155
          %1196 = vmatprep.subr.bf16.mxu0 0
          %1197 = vmatpush2.bf16.msra.mxu0 %v1154
          %1198 = vmatprep.subr.bf16.mxu0 0
          %1199 = vmatpush2.bf16.msra.mxu0 %v1153
          %1200 = vmatprep.subr.bf16.mxu0 0
          %1201 = vmatpush2.bf16.msra.mxu0 %v1152
          %1202 = vmatprep.subr.bf16.mxu0 0
          %1203 = vmatpush2.bf16.msra.mxu0 %v1151
          %1204 = vmatprep.subr.bf16.mxu0 0
          %1205 = vmatpush2.bf16.msra.mxu0 %v1150
          %1206 = vmatprep.mubr.bf16.mxu0 %v1040
          %1207 = vmatmul.mubr.bf16.gmra.mxu0 %v1039
          %v1208 = vpop.f32.mrf.mxu0
          %v1209 = vadd.f32 %v1077, %v1208
          %v1210 = vpop.f32.mrf.mxu0
          %v1211 = vpop.f32.mrf.mxu0
          %v1212 = vadd.f32 %v1077, %v1211
          %v1213 = vpop.f32.mrf.mxu0
          %1214 = vdwg.mxu0
          %v1215 = vadd.f32 %v944, %v1209
          %v1216 = vadd.f32 %v945, %v1212
          %1217 = vst [vmem:[#allocation2] sm:$0xff] %v1215
          %1218 = vst [vmem:[#allocation2 + $0x8] sm:$0xff] %v1216
        $region112: #{glyph_model_forward.1} parent=75 // pred_fallthru
          _
        %v1219 = vld [vmem:[#allocation2] sm:$0xff]
        %v1220 = vld [vmem:[#allocation2 + $0x8] sm:$0xff]
        %v1221 = vld [vmem:[%s610] sm:$0xff]
        %v1222 = vld [vmem:[%s610 + $0x8] sm:$0xff]
        %v1223 = vld [vmem:[%s610 + $0x10] sm:$0xff]
        %v1224 = vpack.c.bf16 %v1220, %v1219
        %v1225 = vld [vmem:[%s574] sm:$0xff]
        %v1226 = vld [vmem:[%s574 + $0x8] sm:$0xf]
        %v1227 = vld [vmem:[%s574 + $0xc] sm:$0xff]
        %v1228 = vld [vmem:[%s574 + $0x14] sm:$0xf]
        %v1229 = vld [vmem:[%s574 + $0x18] sm:$0xff]
        %v1230 = vld [vmem:[%s574 + $0x20] sm:$0xf]
        %v1231 = vld [vmem:[%s574 + $0x24] sm:$0xff]
        %v1232 = vld [vmem:[%s574 + $0x2c] sm:$0xf]
        %v1233 = vld [vmem:[%s574 + $0x30] sm:$0xff]
        %v1234 = vld [vmem:[%s574 + $0x38] sm:$0xf]
        %v1235 = vld [vmem:[%s574 + $0x3c] sm:$0xff]
        %v1236 = vld [vmem:[%s574 + $0x44] sm:$0xf]
        %v1237 = vld [vmem:[%s574 + $0x48] sm:$0xff]
        %v1238 = vld [vmem:[%s574 + $0x50] sm:$0xf]
        %v1239 = vld [vmem:[%s574 + $0x54] sm:$0xff]
        %v1240 = vld [vmem:[%s574 + $0x5c] sm:$0xf]
        %v1241 = vld [vmem:[%s574 + $0x60] sm:$0xff]
        %v1242 = vld [vmem:[%s574 + $0x68] sm:$0xf]
        %v1243 = vld [vmem:[%s574 + $0x6c] sm:$0xff]
        %v1244 = vld [vmem:[%s574 + $0x74] sm:$0xf]
        %v1245 = vld [vmem:[%s574 + $0x78] sm:$0xff]
        %v1246 = vld [vmem:[%s574 + $0x80] sm:$0xf]
        %v1247 = vld [vmem:[%s574 + $0x84] sm:$0xff]
        %v1248 = vld [vmem:[%s574 + $0x8c] sm:$0xf]
        %v1249 = vld [vmem:[%s574 + $0x90] sm:$0xff]
        %v1250 = vld [vmem:[%s574 + $0x98] sm:$0xf]
        %v1251 = vld [vmem:[%s574 + $0x9c] sm:$0xff]
        %v1252 = vld [vmem:[%s574 + $0xa4] sm:$0xf]
        %v1253 = vld [vmem:[%s574 + $0xa8] sm:$0xff]
        %v1254 = vld [vmem:[%s574 + $0xb0] sm:$0xf]
        %v1255 = vld [vmem:[%s574 + $0xb4] sm:$0xff]
        %v1256 = vld [vmem:[%s574 + $0xbc] sm:$0xf]
        %v1257 = vlaneseq
        %v1258 = vshrl.u32 %v1257, 7
        %v1259 = vsub.s32 0, %v1258
        %v1260 = vrot.slane %v1221, %v1259
        %v1261 = vlaneseq
        %v1262 = vshrl.u32 %v1261, 7
        %v1263 = vsub.s32 0, %v1262
        %v1264 = vrot.slane %v1222, %v1263
        %v1265 = vlaneseq
        %v1266 = vshrl.u32 %v1265, 7
        %v1267 = vsub.s32 0, %v1266
        %v1268 = vrot.slane %v1223, %v1267
        %v1301 = vunpack.c.l.b16 %v1225
        %v1302 = vunpack.c.h.b16 %v1225
        %v1303 = vunpack.c.l.b16 %v1226
        %v1304 = vunpack.c.l.b16 %v1227
        %v1305 = vunpack.c.h.b16 %v1227
        %v1306 = vunpack.c.l.b16 %v1228
        %v1307 = vunpack.c.l.b16 %v1229
        %v1308 = vunpack.c.h.b16 %v1229
        %v1309 = vunpack.c.l.b16 %v1230
        %v1310 = vunpack.c.l.b16 %v1231
        %v1311 = vunpack.c.h.b16 %v1231
        %v1312 = vunpack.c.l.b16 %v1232
        %v1313 = vunpack.c.l.b16 %v1233
        %v1314 = vunpack.c.h.b16 %v1233
        %v1315 = vunpack.c.l.b16 %v1234
        %v1316 = vunpack.c.l.b16 %v1235
        %v1317 = vunpack.c.h.b16 %v1235
        %v1318 = vunpack.c.l.b16 %v1236
        %v1319 = vunpack.c.l.b16 %v1237
        %v1320 = vunpack.c.h.b16 %v1237
        %v1321 = vunpack.c.l.b16 %v1238
        %v1322 = vunpack.c.l.b16 %v1239
        %v1323 = vunpack.c.h.b16 %v1239
        %v1324 = vunpack.c.l.b16 %v1240
        %v1325 = vunpack.c.l.b16 %v1241
        %v1326 = vunpack.c.h.b16 %v1241
        %v1327 = vunpack.c.l.b16 %v1242
        %v1328 = vunpack.c.l.b16 %v1243
        %v1329 = vunpack.c.h.b16 %v1243
        %v1330 = vunpack.c.l.b16 %v1244
        %v1331 = vunpack.c.l.b16 %v1245
        %v1332 = vunpack.c.h.b16 %v1245
        %v1333 = vunpack.c.l.b16 %v1246
        %v1334 = vunpack.c.l.b16 %v1247
        %v1335 = vunpack.c.h.b16 %v1247
        %v1336 = vunpack.c.l.b16 %v1248
        %v1337 = vunpack.c.l.b16 %v1249
        %v1338 = vunpack.c.h.b16 %v1249
        %v1339 = vunpack.c.l.b16 %v1250
        %v1340 = vunpack.c.l.b16 %v1251
        %v1341 = vunpack.c.h.b16 %v1251
        %v1342 = vunpack.c.l.b16 %v1252
        %v1343 = vunpack.c.l.b16 %v1253
        %v1344 = vunpack.c.h.b16 %v1253
        %v1345 = vunpack.c.l.b16 %v1254
        %v1346 = vunpack.c.l.b16 %v1255
        %v1347 = vunpack.c.h.b16 %v1255
        %v1348 = vunpack.c.l.b16 %v1256
        %v1349 = vpack.c.b16 %v1304, %v1301
        %v1350 = vpack.c.b16 %v1305, %v1302
        %v1351 = vpack.c.b16 %v1306, %v1303
        %v1352 = vpack.c.b16 %v1310, %v1307
        %v1353 = vpack.c.b16 %v1311, %v1308
        %v1354 = vpack.c.b16 %v1312, %v1309
        %v1355 = vpack.c.b16 %v1316, %v1313
        %v1356 = vpack.c.b16 %v1317, %v1314
        %v1357 = vpack.c.b16 %v1318, %v1315
        %v1358 = vpack.c.b16 %v1322, %v1319
        %v1359 = vpack.c.b16 %v1323, %v1320
        %v1360 = vpack.c.b16 %v1324, %v1321
        %v1361 = vpack.c.b16 %v1328, %v1325
        %v1362 = vpack.c.b16 %v1329, %v1326
        %v1363 = vpack.c.b16 %v1330, %v1327
        %v1364 = vpack.c.b16 %v1334, %v1331
        %v1365 = vpack.c.b16 %v1335, %v1332
        %v1366 = vpack.c.b16 %v1336, %v1333
        %v1367 = vpack.c.b16 %v1340, %v1337
        %v1368 = vpack.c.b16 %v1341, %v1338
        %v1369 = vpack.c.b16 %v1342, %v1339
        %v1370 = vpack.c.b16 %v1346, %v1343
        %v1371 = vpack.c.b16 %v1347, %v1344
        %v1372 = vpack.c.b16 %v1348, %v1345
        %1397 = vmatprep.subr.bf16.mxu0 %v1371
        %1398 = vmatpush1.bf16.msra.mxu0 %v1370
        %1399 = vmatprep.subr.bf16.mxu0 %v1368
        %1400 = vmatpush1.bf16.msra.mxu0 %v1367
        %1401 = vmatprep.subr.bf16.mxu0 %v1365
        %1402 = vmatpush1.bf16.msra.mxu0 %v1364
        %1403 = vmatprep.subr.bf16.mxu0 %v1362
        %1404 = vmatpush1.bf16.msra.mxu0 %v1361
        %1405 = vmatprep.subr.bf16.mxu0 %v1359
        %1406 = vmatpush1.bf16.msra.mxu0 %v1358
        %1407 = vmatprep.subr.bf16.mxu0 %v1356
        %1408 = vmatpush1.bf16.msra.mxu0 %v1355
        %1409 = vmatprep.subr.bf16.mxu0 %v1353
        %1410 = vmatpush1.bf16.msra.mxu0 %v1352
        %1411 = vmatprep.subr.bf16.mxu0 %v1350
        %1412 = vmatpush1.bf16.msra.mxu0 %v1349
        %1413 = vmatprep.subr.bf16.mxu0 0
        %1414 = vmatpush2.bf16.msra.mxu0 0
        %1415 = vmatprep.subr.bf16.mxu0 0
        %1416 = vmatpush2.bf16.msra.mxu0 0
        %1417 = vmatprep.subr.bf16.mxu0 0
        %1418 = vmatpush2.bf16.msra.mxu0 0
        %1419 = vmatprep.subr.bf16.mxu0 0
        %1420 = vmatpush2.bf16.msra.mxu0 0
        %1421 = vmatprep.subr.bf16.mxu0 0
        %1422 = vmatpush2.bf16.msra.mxu0 0
        %1423 = vmatprep.subr.bf16.mxu0 0
        %1424 = vmatpush2.bf16.msra.mxu0 0
        %1425 = vmatprep.subr.bf16.mxu0 0
        %1426 = vmatpush2.bf16.msra.mxu0 0
        %1427 = vmatprep.subr.bf16.mxu0 0
        %1428 = vmatpush2.bf16.msra.mxu0 0
        %1429 = vmatprep.mubr.bf16.mxu0 0
        %1430 = vmatmul.mubr.bf16.gmra.mxu0 %v1224
        %v1431 = vpop.f32.mrf.mxu0
        %v1432 = vadd.f32 %v1260, %v1431
        %v1433 = vpop.f32.mrf.mxu0
        %v1434 = vadd.f32 %v1264, %v1433
        %v1435 = vpop.f32.mrf.mxu0
        %v1436 = vadd.f32 %v1260, %v1435
        %v1437 = vpop.f32.mrf.mxu0
        %v1438 = vadd.f32 %v1264, %v1437
        %1439 = vdwg.mxu0
        %1440 = vmatprep.subr.bf16.mxu0 0
        %1441 = vmatpush1.bf16.msra.mxu0 %v1372
        %1442 = vmatprep.subr.bf16.mxu0 0
        %1443 = vmatpush1.bf16.msra.mxu0 %v1369
        %1444 = vmatprep.subr.bf16.mxu0 0
        %1445 = vmatpush1.bf16.msra.mxu0 %v1366
        %1446 = vmatprep.subr.bf16.mxu0 0
        %1447 = vmatpush1.bf16.msra.mxu0 %v1363
        %1448 = vmatprep.subr.bf16.mxu0 0
        %1449 = vmatpush1.bf16.msra.mxu0 %v1360
        %1450 = vmatprep.subr.bf16.mxu0 0
        %1451 = vmatpush1.bf16.msra.mxu0 %v1357
        %1452 = vmatprep.subr.bf16.mxu0 0
        %1453 = vmatpush1.bf16.msra.mxu0 %v1354
        %1454 = vmatprep.subr.bf16.mxu0 0
        %1455 = vmatpush1.bf16.msra.mxu0 %v1351
        %1456 = vmatprep.subr.bf16.mxu0 0
        %1457 = vmatpush2.bf16.msra.mxu0 0
        %1458 = vmatprep.subr.bf16.mxu0 0
        %1459 = vmatpush2.bf16.msra.mxu0 0
        %1460 = vmatprep.subr.bf16.mxu0 0
        %1461 = vmatpush2.bf16.msra.mxu0 0
        %1462 = vmatprep.subr.bf16.mxu0 0
        %1463 = vmatpush2.bf16.msra.mxu0 0
        %1464 = vmatprep.subr.bf16.mxu0 0
        %1465 = vmatpush2.bf16.msra.mxu0 0
        %1466 = vmatprep.subr.bf16.mxu0 0
        %1467 = vmatpush2.bf16.msra.mxu0 0
        %1468 = vmatprep.subr.bf16.mxu0 0
        %1469 = vmatpush2.bf16.msra.mxu0 0
        %1470 = vmatprep.subr.bf16.mxu0 0
        %1471 = vmatpush2.bf16.msra.mxu0 0
        %1472 = vmatprep.mubr.bf16.mxu0 0
        %1473 = vmatmul.mubr.bf16.gmra.mxu0 %v1224
        %v1474 = vpop.f32.mrf.mxu0
        %v1475 = vadd.f32 %v1268, %v1474
        %v1476 = vpop.f32.mrf.mxu0
        %v1477 = vpop.f32.mrf.mxu0
        %v1478 = vadd.f32 %v1268, %v1477
        %v1479 = vpop.f32.mrf.mxu0
        %1480 = vdwg.mxu0
        %v1481 = vpack.c.bf16 %v1432, %v1432
        %v1482 = vpack.c.bf16 %v1434, %v1434
        %v1483 = vpack.c.bf16 %v1475, %v1475
        %vm1484 = vcmask 523264
        %v1486 = vsel %vm1484, %v1481, 0
        %v1489 = vsel %vm1484, %v1482, 0
        %1491 = vmatprep.subr.bf16.mxu0 0
        %1492 = vmatpush1.bf16.xpose.msra.mxu0 0
        %1493 = vmatprep.subr.bf16.mxu0 0
        %1494 = vmatpush1.bf16.xpose.msra.mxu0 0
        %1495 = vmatprep.subr.bf16.mxu0 0
        %1496 = vmatpush1.bf16.xpose.msra.mxu0 0
        %1497 = vmatprep.subr.bf16.mxu0 0
        %1498 = vmatpush1.bf16.xpose.msra.mxu0 0
        %1499 = vmatprep.subr.bf16.mxu0 0
        %1500 = vmatpush1.bf16.xpose.msra.mxu0 0
        %1501 = vmatprep.subr.bf16.mxu0 0
        %1502 = vmatpush1.bf16.xpose.msra.mxu0 0
        %1503 = vmatprep.subr.bf16.mxu0 0
        %1504 = vmatpush1.bf16.xpose.msra.mxu0 0
        %1505 = vmatprep.subr.bf16.mxu0 0
        %1506 = vmatpush1.bf16.xpose.msra.mxu0 %v1489
        %1507 = vmatprep.subr.bf16.mxu0 0
        %1508 = vmatpush2.bf16.xpose.msra.mxu0 0
        %1509 = vmatprep.subr.bf16.mxu0 0
        %1510 = vmatpush2.bf16.xpose.msra.mxu0 0
        %1511 = vmatprep.subr.bf16.mxu0 0
        %1512 = vmatpush2.bf16.xpose.msra.mxu0 0
        %1513 = vmatprep.subr.bf16.mxu0 0
        %1514 = vmatpush2.bf16.xpose.msra.mxu0 0
        %1515 = vmatprep.subr.bf16.mxu0 0
        %1516 = vmatpush2.bf16.xpose.msra.mxu0 0
        %1517 = vmatprep.subr.bf16.mxu0 0
        %1518 = vmatpush2.bf16.xpose.msra.mxu0 0
        %1519 = vmatprep.subr.bf16.mxu0 0
        %1520 = vmatpush2.bf16.xpose.msra.mxu0 0
        %1521 = vmatprep.subr.bf16.mxu0 0
        %1522 = vmatpush2.bf16.xpose.msra.mxu0 0
        %1523 = vmatprep.mubr.bf16.mxu0 0
        %1524 = vmatmul.mubr.bf16.gmra.mxu0 %v1486
        %v1525 = vpop.f32.mrf.mxu0
        %v1526 = vadd.f32 0.0, %v1525
        %v1527 = vpop.f32.mrf.mxu0
        %v1528 = vpop.f32.mrf.mxu0
        %v1529 = vpop.f32.mrf.mxu0
        %1530 = vdwg.mxu0
        %v1531 = vmul.f32 %v1526, 0.125
        %vm1532 = vcmask 64512
        %v1533 = vsel %vm1532, %v1531, -inf
        %1534 = vmax.xlane.f32.xlu0 %v1533
        %v1535 = vpop.xlane.xlu0 %1534
        %v1536 = vsub.f32 %v1531, %v1535
        %v1537 = vmul.f32 %v1536, 1.442695
        %v1538 = vpow.pop %v1537
        %v1539 = vsel %vm1532, %v1538, 0.0
        %1540 = vadd.xlane.f32.xlu0 %v1539
        %v1541 = vpop.xlane.xlu0 %1540
        %v1542 = vrcp.pop %v1541
        %v1543 = vmul.f32 %v1538, %v1542
        %v1544 = vpack.c.bf16 %v1543, %v1543
        %v1546 = vsel %vm1532, %v1544, 0
        %vm1548 = vcmask 1043456
        %v1550 = vsel %vm1548, %v1483, 0
        %1552 = vmatprep.subr.bf16.mxu0 0
        %1553 = vmatpush1.bf16.msra.mxu0 0
        %1554 = vmatprep.subr.bf16.mxu0 0
        %1555 = vmatpush1.bf16.msra.mxu0 0
        %1556 = vmatprep.subr.bf16.mxu0 0
        %1557 = vmatpush1.bf16.msra.mxu0 0
        %1558 = vmatprep.subr.bf16.mxu0 0
        %1559 = vmatpush1.bf16.msra.mxu0 0
        %1560 = vmatprep.subr.bf16.mxu0 0
        %1561 = vmatpush1.bf16.msra.mxu0 0
        %1562 = vmatprep.subr.bf16.mxu0 0
        %1563 = vmatpush1.bf16.msra.mxu0 0
        %1564 = vmatprep.subr.bf16.mxu0 0
        %1565 = vmatpush1.bf16.msra.mxu0 0
        %1566 = vmatprep.subr.bf16.mxu0 0
        %1567 = vmatpush1.bf16.msra.mxu0 %v1550
        %1568 = vmatprep.subr.bf16.mxu0 0
        %1569 = vmatpush2.bf16.msra.mxu0 0
        %1570 = vmatprep.subr.bf16.mxu0 0
        %1571 = vmatpush2.bf16.msra.mxu0 0
        %1572 = vmatprep.subr.bf16.mxu0 0
        %1573 = vmatpush2.bf16.msra.mxu0 0
        %1574 = vmatprep.subr.bf16.mxu0 0
        %1575 = vmatpush2.bf16.msra.mxu0 0
        %1576 = vmatprep.subr.bf16.mxu0 0
        %1577 = vmatpush2.bf16.msra.mxu0 0
        %1578 = vmatprep.subr.bf16.mxu0 0
        %1579 = vmatpush2.bf16.msra.mxu0 0
        %1580 = vmatprep.subr.bf16.mxu0 0
        %1581 = vmatpush2.bf16.msra.mxu0 0
        %1582 = vmatprep.subr.bf16.mxu0 0
        %1583 = vmatpush2.bf16.msra.mxu0 0
        %1584 = vmatprep.mubr.bf16.mxu0 0
        %1585 = vmatmul.mubr.bf16.gmra.mxu0 %v1546
        %v1586 = vpop.f32.mrf.mxu0
        %v1587 = vadd.f32 0.0, %v1586
        %v1588 = vpop.f32.mrf.mxu0
        %v1589 = vpop.f32.mrf.mxu0
        %v1590 = vpop.f32.mrf.mxu0
        %1591 = vdwg.mxu0
        %1593 = vrot.lane.b32.xlu0 %v1481, 64
        %v1594 = vpop.permute.xlu0 %1593
        %1596 = vrot.lane.b32.xlu0 %v1482, 64
        %v1597 = vpop.permute.xlu0 %1596
        %v1599 = vsel %vm1484, %v1594, 0
        %v1602 = vsel %vm1484, %v1597, 0
        %1604 = vmatprep.subr.bf16.mxu0 0
        %1605 = vmatpush1.bf16.xpose.msra.mxu0 0
        %1606 = vmatprep.subr.bf16.mxu0 0
        %1607 = vmatpush1.bf16.xpose.msra.mxu0 0
        %1608 = vmatprep.subr.bf16.mxu0 0
        %1609 = vmatpush1.bf16.xpose.msra.mxu0 0
        %1610 = vmatprep.subr.bf16.mxu0 0
        %1611 = vmatpush1.bf16.xpose.msra.mxu0 0
        %1612 = vmatprep.subr.bf16.mxu0 0
        %1613 = vmatpush1.bf16.xpose.msra.mxu0 0
        %1614 = vmatprep.subr.bf16.mxu0 0
        %1615 = vmatpush1.bf16.xpose.msra.mxu0 0
        %1616 = vmatprep.subr.bf16.mxu0 0
        %1617 = vmatpush1.bf16.xpose.msra.mxu0 0
        %1618 = vmatprep.subr.bf16.mxu0 0
        %1619 = vmatpush1.bf16.xpose.msra.mxu0 %v1602
        %1620 = vmatprep.subr.bf16.mxu0 0
        %1621 = vmatpush2.bf16.xpose.msra.mxu0 0
        %1622 = vmatprep.subr.bf16.mxu0 0
        %1623 = vmatpush2.bf16.xpose.msra.mxu0 0
        %1624 = vmatprep.subr.bf16.mxu0 0
        %1625 = vmatpush2.bf16.xpose.msra.mxu0 0
        %1626 = vmatprep.subr.bf16.mxu0 0
        %1627 = vmatpush2.bf16.xpose.msra.mxu0 0
        %1628 = vmatprep.subr.bf16.mxu0 0
        %1629 = vmatpush2.bf16.xpose.msra.mxu0 0
        %1630 = vmatprep.subr.bf16.mxu0 0
        %1631 = vmatpush2.bf16.xpose.msra.mxu0 0
        %1632 = vmatprep.subr.bf16.mxu0 0
        %1633 = vmatpush2.bf16.xpose.msra.mxu0 0
        %1634 = vmatprep.subr.bf16.mxu0 0
        %1635 = vmatpush2.bf16.xpose.msra.mxu0 0
        %1636 = vmatprep.mubr.bf16.mxu0 0
        %1637 = vmatmul.mubr.bf16.gmra.mxu0 %v1599
        %v1638 = vpop.f32.mrf.mxu0
        %v1639 = vadd.f32 0.0, %v1638
        %v1640 = vpop.f32.mrf.mxu0
        %v1641 = vpop.f32.mrf.mxu0
        %v1642 = vpop.f32.mrf.mxu0
        %1643 = vdwg.mxu0
        %v1644 = vmul.f32 %v1639, 0.125
        %v1645 = vsel %vm1532, %v1644, -inf
        %1646 = vmax.xlane.f32.xlu0 %v1645
        %v1647 = vpop.xlane.xlu0 %1646
        %v1648 = vsub.f32 %v1644, %v1647
        %v1649 = vmul.f32 %v1648, 1.442695
        %v1650 = vpow.pop %v1649
        %v1651 = vsel %vm1532, %v1650, 0.0
        %1652 = vadd.xlane.f32.xlu0 %v1651
        %v1653 = vpop.xlane.xlu0 %1652
        %v1654 = vrcp.pop %v1653
        %v1655 = vmul.f32 %v1650, %v1654
        %v1656 = vpack.c.bf16 %v1655, %v1655
        %1658 = vrot.lane.b32.xlu0 %v1483, 64
        %v1659 = vpop.permute.xlu0 %1658
        %v1661 = vsel %vm1532, %v1656, 0
        %v1664 = vsel %vm1548, %v1659, 0
        %1666 = vmatprep.subr.bf16.mxu0 0
        %1667 = vmatpush1.bf16.msra.mxu0 0
        %1668 = vmatprep.subr.bf16.mxu0 0
        %1669 = vmatpush1.bf16.msra.mxu0 0
        %1670 = vmatprep.subr.bf16.mxu0 0
        %1671 = vmatpush1.bf16.msra.mxu0 0
        %1672 = vmatprep.subr.bf16.mxu0 0
        %1673 = vmatpush1.bf16.msra.mxu0 0
        %1674 = vmatprep.subr.bf16.mxu0 0
        %1675 = vmatpush1.bf16.msra.mxu0 0
        %1676 = vmatprep.subr.bf16.mxu0 0
        %1677 = vmatpush1.bf16.msra.mxu0 0
        %1678 = vmatprep.subr.bf16.mxu0 0
        %1679 = vmatpush1.bf16.msra.mxu0 0
        %1680 = vmatprep.subr.bf16.mxu0 0
        %1681 = vmatpush1.bf16.msra.mxu0 %v1664
        %1682 = vmatprep.subr.bf16.mxu0 0
        %1683 = vmatpush2.bf16.msra.mxu0 0
        %1684 = vmatprep.subr.bf16.mxu0 0
        %1685 = vmatpush2.bf16.msra.mxu0 0
        %1686 = vmatprep.subr.bf16.mxu0 0
        %1687 = vmatpush2.bf16.msra.mxu0 0
        %1688 = vmatprep.subr.bf16.mxu0 0
        %1689 = vmatpush2.bf16.msra.mxu0 0
        %1690 = vmatprep.subr.bf16.mxu0 0
        %1691 = vmatpush2.bf16.msra.mxu0 0
        %1692 = vmatprep.subr.bf16.mxu0 0
        %1693 = vmatpush2.bf16.msra.mxu0 0
        %1694 = vmatprep.subr.bf16.mxu0 0
        %1695 = vmatpush2.bf16.msra.mxu0 0
        %1696 = vmatprep.subr.bf16.mxu0 0
        %1697 = vmatpush2.bf16.msra.mxu0 0
        %1698 = vmatprep.mubr.bf16.mxu0 0
        %1699 = vmatmul.mubr.bf16.gmra.mxu0 %v1661
        %v1700 = vpop.f32.mrf.mxu0
        %v1701 = vadd.f32 0.0, %v1700
        %v1702 = vpop.f32.mrf.mxu0
        %v1703 = vpop.f32.mrf.mxu0
        %v1704 = vpop.f32.mrf.mxu0
        %1705 = vdwg.mxu0
        %1707 = vrot.lane.b32.xlu0 %v1701, 64
        %v1708 = vpop.permute.xlu0 %1707
        %v1710 = vsel %vm1484, %v1587, %v1708
        %v1711 = vpack.c.bf16 %v1436, %v1436
        %v1712 = vpack.c.bf16 %v1438, %v1438
        %v1713 = vpack.c.bf16 %v1478, %v1478
        %v1715 = vsel %vm1484, %v1711, 0
        %v1718 = vsel %vm1484, %v1712, 0
        %1720 = vmatprep.subr.bf16.mxu0 0
        %1721 = vmatpush1.bf16.xpose.msra.mxu0 0
        %1722 = vmatprep.subr.bf16.mxu0 0
        %1723 = vmatpush1.bf16.xpose.msra.mxu0 0
        %1724 = vmatprep.subr.bf16.mxu0 0
        %1725 = vmatpush1.bf16.xpose.msra.mxu0 0
        %1726 = vmatprep.subr.bf16.mxu0 0
        %1727 = vmatpush1.bf16.xpose.msra.mxu0 0
        %1728 = vmatprep.subr.bf16.mxu0 0
        %1729 = vmatpush1.bf16.xpose.msra.mxu0 0
        %1730 = vmatprep.subr.bf16.mxu0 0
        %1731 = vmatpush1.bf16.xpose.msra.mxu0 0
        %1732 = vmatprep.subr.bf16.mxu0 0
        %1733 = vmatpush1.bf16.xpose.msra.mxu0 0
        %1734 = vmatprep.subr.bf16.mxu0 0
        %1735 = vmatpush1.bf16.xpose.msra.mxu0 %v1718
        %1736 = vmatprep.subr.bf16.mxu0 0
        %1737 = vmatpush2.bf16.xpose.msra.mxu0 0
        %1738 = vmatprep.subr.bf16.mxu0 0
        %1739 = vmatpush2.bf16.xpose.msra.mxu0 0
        %1740 = vmatprep.subr.bf16.mxu0 0
        %1741 = vmatpush2.bf16.xpose.msra.mxu0 0
        %1742 = vmatprep.subr.bf16.mxu0 0
        %1743 = vmatpush2.bf16.xpose.msra.mxu0 0
        %1744 = vmatprep.subr.bf16.mxu0 0
        %1745 = vmatpush2.bf16.xpose.msra.mxu0 0
        %1746 = vmatprep.subr.bf16.mxu0 0
        %1747 = vmatpush2.bf16.xpose.msra.mxu0 0
        %1748 = vmatprep.subr.bf16.mxu0 0
        %1749 = vmatpush2.bf16.xpose.msra.mxu0 0
        %1750 = vmatprep.subr.bf16.mxu0 0
        %1751 = vmatpush2.bf16.xpose.msra.mxu0 0
        %1752 = vmatprep.mubr.bf16.mxu0 0
        %1753 = vmatmul.mubr.bf16.gmra.mxu0 %v1715
        %v1754 = vpop.f32.mrf.mxu0
        %v1755 = vadd.f32 0.0, %v1754
        %v1756 = vpop.f32.mrf.mxu0
        %v1757 = vpop.f32.mrf.mxu0
        %v1758 = vpop.f32.mrf.mxu0
        %1759 = vdwg.mxu0
        %v1760 = vmul.f32 %v1755, 0.125
        %v1761 = vsel %vm1532, %v1760, -inf
        %1762 = vmax.xlane.f32.xlu0 %v1761
        %v1763 = vpop.xlane.xlu0 %1762
        %v1764 = vsub.f32 %v1760, %v1763
        %v1765 = vmul.f32 %v1764, 1.442695
        %v1766 = vpow.pop %v1765
        %v1767 = vsel %vm1532, %v1766, 0.0
        %1768 = vadd.xlane.f32.xlu0 %v1767
        %v1769 = vpop.xlane.xlu0 %1768
        %v1770 = vrcp.pop %v1769
        %v1771 = vmul.f32 %v1766, %v1770
        %v1772 = vpack.c.bf16 %v1771, %v1771
        %v1774 = vsel %vm1532, %v1772, 0
        %v1777 = vsel %vm1548, %v1713, 0
        %1779 = vmatprep.subr.bf16.mxu0 0
        %1780 = vmatpush1.bf16.msra.mxu0 0
        %1781 = vmatprep.subr.bf16.mxu0 0
        %1782 = vmatpush1.bf16.msra.mxu0 0
        %1783 = vmatprep.subr.bf16.mxu0 0
        %1784 = vmatpush1.bf16.msra.mxu0 0
        %1785 = vmatprep.subr.bf16.mxu0 0
        %1786 = vmatpush1.bf16.msra.mxu0 0
        %1787 = vmatprep.subr.bf16.mxu0 0
        %1788 = vmatpush1.bf16.msra.mxu0 0
        %1789 = vmatprep.subr.bf16.mxu0 0
        %1790 = vmatpush1.bf16.msra.mxu0 0
        %1791 = vmatprep.subr.bf16.mxu0 0
        %1792 = vmatpush1.bf16.msra.mxu0 0
        %1793 = vmatprep.subr.bf16.mxu0 0
        %1794 = vmatpush1.bf16.msra.mxu0 %v1777
        %1795 = vmatprep.subr.bf16.mxu0 0
        %1796 = vmatpush2.bf16.msra.mxu0 0
        %1797 = vmatprep.subr.bf16.mxu0 0
        %1798 = vmatpush2.bf16.msra.mxu0 0
        %1799 = vmatprep.subr.bf16.mxu0 0
        %1800 = vmatpush2.bf16.msra.mxu0 0
        %1801 = vmatprep.subr.bf16.mxu0 0
        %1802 = vmatpush2.bf16.msra.mxu0 0
        %1803 = vmatprep.subr.bf16.mxu0 0
        %1804 = vmatpush2.bf16.msra.mxu0 0
        %1805 = vmatprep.subr.bf16.mxu0 0
        %1806 = vmatpush2.bf16.msra.mxu0 0
        %1807 = vmatprep.subr.bf16.mxu0 0
        %1808 = vmatpush2.bf16.msra.mxu0 0
        %1809 = vmatprep.subr.bf16.mxu0 0
        %1810 = vmatpush2.bf16.msra.mxu0 0
        %1811 = vmatprep.mubr.bf16.mxu0 0
        %1812 = vmatmul.mubr.bf16.gmra.mxu0 %v1774
        %v1813 = vpop.f32.mrf.mxu0
        %v1814 = vadd.f32 0.0, %v1813
        %v1815 = vpop.f32.mrf.mxu0
        %v1816 = vpop.f32.mrf.mxu0
        %v1817 = vpop.f32.mrf.mxu0
        %1818 = vdwg.mxu0
        %1820 = vrot.lane.b32.xlu0 %v1711, 64
        %v1821 = vpop.permute.xlu0 %1820
        %1823 = vrot.lane.b32.xlu0 %v1712, 64
        %v1824 = vpop.permute.xlu0 %1823
        %v1826 = vsel %vm1484, %v1821, 0
        %v1829 = vsel %vm1484, %v1824, 0
        %1831 = vmatprep.subr.bf16.mxu0 0
        %1832 = vmatpush1.bf16.xpose.msra.mxu0 0
        %1833 = vmatprep.subr.bf16.mxu0 0
        %1834 = vmatpush1.bf16.xpose.msra.mxu0 0
        %1835 = vmatprep.subr.bf16.mxu0 0
        %1836 = vmatpush1.bf16.xpose.msra.mxu0 0
        %1837 = vmatprep.subr.bf16.mxu0 0
        %1838 = vmatpush1.bf16.xpose.msra.mxu0 0
        %1839 = vmatprep.subr.bf16.mxu0 0
        %1840 = vmatpush1.bf16.xpose.msra.mxu0 0
        %1841 = vmatprep.subr.bf16.mxu0 0
        %1842 = vmatpush1.bf16.xpose.msra.mxu0 0
        %1843 = vmatprep.subr.bf16.mxu0 0
        %1844 = vmatpush1.bf16.xpose.msra.mxu0 0
        %1845 = vmatprep.subr.bf16.mxu0 0
        %1846 = vmatpush1.bf16.xpose.msra.mxu0 %v1829
        %1847 = vmatprep.subr.bf16.mxu0 0
        %1848 = vmatpush2.bf16.xpose.msra.mxu0 0
        %1849 = vmatprep.subr.bf16.mxu0 0
        %1850 = vmatpush2.bf16.xpose.msra.mxu0 0
        %1851 = vmatprep.subr.bf16.mxu0 0
        %1852 = vmatpush2.bf16.xpose.msra.mxu0 0
        %1853 = vmatprep.subr.bf16.mxu0 0
        %1854 = vmatpush2.bf16.xpose.msra.mxu0 0
        %1855 = vmatprep.subr.bf16.mxu0 0
        %1856 = vmatpush2.bf16.xpose.msra.mxu0 0
        %1857 = vmatprep.subr.bf16.mxu0 0
        %1858 = vmatpush2.bf16.xpose.msra.mxu0 0
        %1859 = vmatprep.subr.bf16.mxu0 0
        %1860 = vmatpush2.bf16.xpose.msra.mxu0 0
        %1861 = vmatprep.subr.bf16.mxu0 0
        %1862 = vmatpush2.bf16.xpose.msra.mxu0 0
        %1863 = vmatprep.mubr.bf16.mxu0 0
        %1864 = vmatmul.mubr.bf16.gmra.mxu0 %v1826
        %v1865 = vpop.f32.mrf.mxu0
        %v1866 = vadd.f32 0.0, %v1865
        %v1867 = vpop.f32.mrf.mxu0
        %v1868 = vpop.f32.mrf.mxu0
        %v1869 = vpop.f32.mrf.mxu0
        %1870 = vdwg.mxu0
        %v1871 = vmul.f32 %v1866, 0.125
        %v1872 = vsel %vm1532, %v1871, -inf
        %1873 = vmax.xlane.f32.xlu0 %v1872
        %v1874 = vpop.xlane.xlu0 %1873
        %v1875 = vsub.f32 %v1871, %v1874
        %v1876 = vmul.f32 %v1875, 1.442695
        %v1877 = vpow.pop %v1876
        %v1878 = vsel %vm1532, %v1877, 0.0
        %1879 = vadd.xlane.f32.xlu0 %v1878
        %v1880 = vpop.xlane.xlu0 %1879
        %v1881 = vrcp.pop %v1880
        %v1882 = vmul.f32 %v1877, %v1881
        %v1883 = vpack.c.bf16 %v1882, %v1882
        %1885 = vrot.lane.b32.xlu0 %v1713, 64
        %v1886 = vpop.permute.xlu0 %1885
        %v1888 = vsel %vm1532, %v1883, 0
        %v1891 = vsel %vm1548, %v1886, 0
        %1893 = vmatprep.subr.bf16.mxu0 0
        %1894 = vmatpush1.bf16.msra.mxu0 0
        %1895 = vmatprep.subr.bf16.mxu0 0
        %1896 = vmatpush1.bf16.msra.mxu0 0
        %1897 = vmatprep.subr.bf16.mxu0 0
        %1898 = vmatpush1.bf16.msra.mxu0 0
        %1899 = vmatprep.subr.bf16.mxu0 0
        %1900 = vmatpush1.bf16.msra.mxu0 0
        %1901 = vmatprep.subr.bf16.mxu0 0
        %1902 = vmatpush1.bf16.msra.mxu0 0
        %1903 = vmatprep.subr.bf16.mxu0 0
        %1904 = vmatpush1.bf16.msra.mxu0 0
        %1905 = vmatprep.subr.bf16.mxu0 0
        %1906 = vmatpush1.bf16.msra.mxu0 0
        %1907 = vmatprep.subr.bf16.mxu0 0
        %1908 = vmatpush1.bf16.msra.mxu0 %v1891
        %1909 = vmatprep.subr.bf16.mxu0 0
        %1910 = vmatpush2.bf16.msra.mxu0 0
        %1911 = vmatprep.subr.bf16.mxu0 0
        %1912 = vmatpush2.bf16.msra.mxu0 0
        %1913 = vmatprep.subr.bf16.mxu0 0
        %1914 = vmatpush2.bf16.msra.mxu0 0
        %1915 = vmatprep.subr.bf16.mxu0 0
        %1916 = vmatpush2.bf16.msra.mxu0 0
        %1917 = vmatprep.subr.bf16.mxu0 0
        %1918 = vmatpush2.bf16.msra.mxu0 0
        %1919 = vmatprep.subr.bf16.mxu0 0
        %1920 = vmatpush2.bf16.msra.mxu0 0
        %1921 = vmatprep.subr.bf16.mxu0 0
        %1922 = vmatpush2.bf16.msra.mxu0 0
        %1923 = vmatprep.subr.bf16.mxu0 0
        %1924 = vmatpush2.bf16.msra.mxu0 0
        %1925 = vmatprep.mubr.bf16.mxu0 0
        %1926 = vmatmul.mubr.bf16.gmra.mxu0 %v1888
        %v1927 = vpop.f32.mrf.mxu0
        %v1928 = vadd.f32 0.0, %v1927
        %v1929 = vpop.f32.mrf.mxu0
        %v1930 = vpop.f32.mrf.mxu0
        %v1931 = vpop.f32.mrf.mxu0
        %1932 = vdwg.mxu0
        %1934 = vrot.lane.b32.xlu0 %v1928, 64
        %v1935 = vpop.permute.xlu0 %1934
        %v1937 = vsel %vm1484, %v1814, %v1935
        %v1938 = vpack.c.bf16 %v1937, %v1710
        %v1939 = vld [vmem:[%s583] sm:$0xf]
        %v1940 = vld [vmem:[%s583 + $0x4] sm:$0xf]
        %v1941 = vld [vmem:[%s583 + $0x8] sm:$0xf]
        %v1942 = vld [vmem:[%s583 + $0xc] sm:$0xf]
        %v1943 = vld [vmem:[%s583 + $0x10] sm:$0xf]
        %v1944 = vld [vmem:[%s583 + $0x14] sm:$0xf]
        %v1945 = vld [vmem:[%s583 + $0x18] sm:$0xf]
        %v1946 = vld [vmem:[%s583 + $0x1c] sm:$0xf]
        %v1947 = vld [vmem:[%s583 + $0x20] sm:$0xf]
        %v1948 = vld [vmem:[%s583 + $0x24] sm:$0xf]
        %v1949 = vld [vmem:[%s583 + $0x28] sm:$0xf]
        %v1950 = vld [vmem:[%s583 + $0x2c] sm:$0xf]
        %v1951 = vld [vmem:[%s583 + $0x30] sm:$0xf]
        %v1952 = vld [vmem:[%s583 + $0x34] sm:$0xf]
        %v1953 = vld [vmem:[%s583 + $0x38] sm:$0xf]
        %v1954 = vld [vmem:[%s583 + $0x3c] sm:$0xf]
        %v1955 = vlaneseq
        %v1956 = vshrl.u32 %v1955, 7
        %v1957 = vsub.s32 1, %v1956
        %v1958 = vrot.slane %v1221, %v1957
        %v1975 = vunpack.c.l.b16 %v1939
        %v1976 = vunpack.c.l.b16 %v1940
        %v1977 = vunpack.c.l.b16 %v1941
        %v1978 = vunpack.c.l.b16 %v1942
        %v1979 = vunpack.c.l.b16 %v1943
        %v1980 = vunpack.c.l.b16 %v1944
        %v1981 = vunpack.c.l.b16 %v1945
        %v1982 = vunpack.c.l.b16 %v1946
        %v1983 = vunpack.c.l.b16 %v1947
        %v1984 = vunpack.c.l.b16 %v1948
        %v1985 = vunpack.c.l.b16 %v1949
        %v1986 = vunpack.c.l.b16 %v1950
        %v1987 = vunpack.c.l.b16 %v1951
        %v1988 = vunpack.c.l.b16 %v1952
        %v1989 = vunpack.c.l.b16 %v1953
        %v1990 = vunpack.c.l.b16 %v1954
        %v1991 = vpack.c.b16 %v1976, %v1975
        %v1992 = vpack.c.b16 %v1978, %v1977
        %v1993 = vpack.c.b16 %v1980, %v1979
        %v1994 = vpack.c.b16 %v1982, %v1981
        %v1995 = vpack.c.b16 %v1984, %v1983
        %v1996 = vpack.c.b16 %v1986, %v1985
        %v1997 = vpack.c.b16 %v1988, %v1987
        %v1998 = vpack.c.b16 %v1990, %v1989
        %2007 = vmatprep.subr.bf16.mxu0 0
        %2008 = vmatpush1.bf16.msra.mxu0 %v1998
        %2009 = vmatprep.subr.bf16.mxu0 0
        %2010 = vmatpush1.bf16.msra.mxu0 %v1997
        %2011 = vmatprep.subr.bf16.mxu0 0
        %2012 = vmatpush1.bf16.msra.mxu0 %v1996
        %2013 = vmatprep.subr.bf16.mxu0 0
        %2014 = vmatpush1.bf16.msra.mxu0 %v1995
        %2015 = vmatprep.subr.bf16.mxu0 0
        %2016 = vmatpush1.bf16.msra.mxu0 %v1994
        %2017 = vmatprep.subr.bf16.mxu0 0
        %2018 = vmatpush1.bf16.msra.mxu0 %v1993
        %2019 = vmatprep.subr.bf16.mxu0 0
        %2020 = vmatpush1.bf16.msra.mxu0 %v1992
        %2021 = vmatprep.subr.bf16.mxu0 0
        %2022 = vmatpush1.bf16.msra.mxu0 %v1991
        %2023 = vmatprep.subr.bf16.mxu0 0
        %2024 = vmatpush2.bf16.msra.mxu0 0
        %2025 = vmatprep.subr.bf16.mxu0 0
        %2026 = vmatpush2.bf16.msra.mxu0 0
        %2027 = vmatprep.subr.bf16.mxu0 0
        %2028 = vmatpush2.bf16.msra.mxu0 0
        %2029 = vmatprep.subr.bf16.mxu0 0
        %2030 = vmatpush2.bf16.msra.mxu0 0
        %2031 = vmatprep.subr.bf16.mxu0 0
        %2032 = vmatpush2.bf16.msra.mxu0 0
        %2033 = vmatprep.subr.bf16.mxu0 0
        %2034 = vmatpush2.bf16.msra.mxu0 0
        %2035 = vmatprep.subr.bf16.mxu0 0
        %2036 = vmatpush2.bf16.msra.mxu0 0
        %2037 = vmatprep.subr.bf16.mxu0 0
        %2038 = vmatpush2.bf16.msra.mxu0 0
        %2039 = vmatprep.mubr.bf16.mxu0 0
        %2040 = vmatmul.mubr.bf16.gmra.mxu0 %v1938
        %v2041 = vpop.f32.mrf.mxu0
        %v2042 = vadd.f32 %v1958, %v2041
        %v2043 = vpop.f32.mrf.mxu0
        %v2044 = vpop.f32.mrf.mxu0
        %v2045 = vadd.f32 %v1958, %v2044
        %v2046 = vpop.f32.mrf.mxu0
        %2047 = vdwg.mxu0
        %v2048 = vadd.f32 %v1219, %v2042
        %v2049 = vadd.f32 %v1220, %v2045
        %2050 = vadd.xlane.f32.xlu0 %v2048
        %v2051 = vpop.xlane.xlu0 %2050
        %2052 = vadd.xlane.f32.xlu0 %v2049
        %v2053 = vpop.xlane.xlu0 %2052
        %v2054 = vrcp.pop 128.0
        %v2055 = vmul.f32 %v2051, %v2054
        %v2056 = vmul.f32 %v2053, %v2054
        %v2057 = vsub.f32 %v2048, %v2055
        %v2058 = vsub.f32 %v2049, %v2056
        %v2059 = vmul.f32 %v2057, %v2057
        %v2060 = vmul.f32 %v2058, %v2058
        %2061 = vadd.xlane.f32.xlu0 %v2059
        %v2062 = vpop.xlane.xlu0 %2061
        %2063 = vadd.xlane.f32.xlu0 %v2060
        %v2064 = vpop.xlane.xlu0 %2063
        %v2065 = vmul.f32 %v2062, %v2054
        %v2066 = vmul.f32 %v2064, %v2054
        %v2067 = vadd.f32 %v2065, 1e-12
        %v2068 = vadd.f32 %v2066, 1e-12
        %v2069 = vrsqrt.pop %v2067
        %v2070 = vrsqrt.pop %v2068
        %v2071 = vmul.f32 %v2057, %v2069
        %v2072 = vmul.f32 %v2058, %v2070
        %v2073 = vlaneseq
        %v2074 = vshrl.u32 %v2073, 7
        %v2075 = vsub.s32 4, %v2074
        %v2076 = vrot.slane %v1221, %v2075
        %v2077 = vmul.f32 %v2071, %v2076
        %v2078 = vmul.f32 %v2072, %v2076
        %v2079 = vlaneseq
        %v2080 = vshrl.u32 %v2079, 7
        %v2081 = vsub.s32 5, %v2080
        %v2082 = vrot.slane %v1221, %v2081
        %v2083 = vadd.f32 %v2077, %v2082
        %v2084 = vadd.f32 %v2078, %v2082
        %v2085 = vpack.c.bf16 %v2084, %v2083
        %v2086 = vld [vmem:[%s592] sm:$0xff]
        %v2087 = vld [vmem:[%s592 + $0x8] sm:$0xff]
        %v2088 = vld [vmem:[%s592 + $0x10] sm:$0xff]
        %v2089 = vld [vmem:[%s592 + $0x18] sm:$0xff]
        %v2090 = vld [vmem:[%s592 + $0x20] sm:$0xff]
        %v2091 = vld [vmem:[%s592 + $0x28] sm:$0xff]
        %v2092 = vld [vmem:[%s592 + $0x30] sm:$0xff]
        %v2093 = vld [vmem:[%s592 + $0x38] sm:$0xff]
        %v2094 = vld [vmem:[%s592 + $0x40] sm:$0xff]
        %v2095 = vld [vmem:[%s592 + $0x48] sm:$0xff]
        %v2096 = vld [vmem:[%s592 + $0x50] sm:$0xff]
        %v2097 = vld [vmem:[%s592 + $0x58] sm:$0xff]
        %v2098 = vld [vmem:[%s592 + $0x60] sm:$0xff]
        %v2099 = vld [vmem:[%s592 + $0x68] sm:$0xff]
        %v2100 = vld [vmem:[%s592 + $0x70] sm:$0xff]
        %v2101 = vld [vmem:[%s592 + $0x78] sm:$0xff]
        %v2102 = vlaneseq
        %v2103 = vshrl.u32 %v2102, 7
        %v2104 = vsub.s32 2, %v2103
        %v2105 = vrot.slane %v1221, %v2104
        %v2106 = vlaneseq
        %v2107 = vshrl.u32 %v2106, 7
        %v2108 = vsub.s32 2, %v2107
        %v2109 = vrot.slane %v1222, %v2108
        %v2126 = vunpack.c.l.b16 %v2086
        %v2127 = vunpack.c.h.b16 %v2086
        %v2128 = vunpack.c.l.b16 %v2087
        %v2129 = vunpack.c.h.b16 %v2087
        %v2130 = vunpack.c.l.b16 %v2088
        %v2131 = vunpack.c.h.b16 %v2088
        %v2132 = vunpack.c.l.b16 %v2089
        %v2133 = vunpack.c.h.b16 %v2089
        %v2134 = vunpack.c.l.b16 %v2090
        %v2135 = vunpack.c.h.b16 %v2090
        %v2136 = vunpack.c.l.b16 %v2091
        %v2137 = vunpack.c.h.b16 %v2091
        %v2138 = vunpack.c.l.b16 %v2092
        %v2139 = vunpack.c.h.b16 %v2092
        %v2140 = vunpack.c.l.b16 %v2093
        %v2141 = vunpack.c.h.b16 %v2093
        %v2142 = vunpack.c.l.b16 %v2094
        %v2143 = vunpack.c.h.b16 %v2094
        %v2144 = vunpack.c.l.b16 %v2095
        %v2145 = vunpack.c.h.b16 %v2095
        %v2146 = vunpack.c.l.b16 %v2096
        %v2147 = vunpack.c.h.b16 %v2096
        %v2148 = vunpack.c.l.b16 %v2097
        %v2149 = vunpack.c.h.b16 %v2097
        %v2150 = vunpack.c.l.b16 %v2098
        %v2151 = vunpack.c.h.b16 %v2098
        %v2152 = vunpack.c.l.b16 %v2099
        %v2153 = vunpack.c.h.b16 %v2099
        %v2154 = vunpack.c.l.b16 %v2100
        %v2155 = vunpack.c.h.b16 %v2100
        %v2156 = vunpack.c.l.b16 %v2101
        %v2157 = vunpack.c.h.b16 %v2101
        %v2158 = vpack.c.b16 %v2128, %v2126
        %v2159 = vpack.c.b16 %v2129, %v2127
        %v2160 = vpack.c.b16 %v2132, %v2130
        %v2161 = vpack.c.b16 %v2133, %v2131
        %v2162 = vpack.c.b16 %v2136, %v2134
        %v2163 = vpack.c.b16 %v2137, %v2135
        %v2164 = vpack.c.b16 %v2140, %v2138
        %v2165 = vpack.c.b16 %v2141, %v2139
        %v2166 = vpack.c.b16 %v2144, %v2142
        %v2167 = vpack.c.b16 %v2145, %v2143
        %v2168 = vpack.c.b16 %v2148, %v2146
        %v2169 = vpack.c.b16 %v2149, %v2147
        %v2170 = vpack.c.b16 %v2152, %v2150
        %v2171 = vpack.c.b16 %v2153, %v2151
        %v2172 = vpack.c.b16 %v2156, %v2154
        %v2173 = vpack.c.b16 %v2157, %v2155
        %2190 = vmatprep.subr.bf16.mxu0 %v2173
        %2191 = vmatpush1.bf16.msra.mxu0 %v2172
        %2192 = vmatprep.subr.bf16.mxu0 %v2171
        %2193 = vmatpush1.bf16.msra.mxu0 %v2170
        %2194 = vmatprep.subr.bf16.mxu0 %v2169
        %2195 = vmatpush1.bf16.msra.mxu0 %v2168
        %2196 = vmatprep.subr.bf16.mxu0 %v2167
        %2197 = vmatpush1.bf16.msra.mxu0 %v2166
        %2198 = vmatprep.subr.bf16.mxu0 %v2165
        %2199 = vmatpush1.bf16.msra.mxu0 %v2164
        %2200 = vmatprep.subr.bf16.mxu0 %v2163
        %2201 = vmatpush1.bf16.msra.mxu0 %v2162
        %2202 = vmatprep.subr.bf16.mxu0 %v2161
        %2203 = vmatpush1.bf16.msra.mxu0 %v2160
        %2204 = vmatprep.subr.bf16.mxu0 %v2159
        %2205 = vmatpush1.bf16.msra.mxu0 %v2158
        %2206 = vmatprep.subr.bf16.mxu0 0
        %2207 = vmatpush2.bf16.msra.mxu0 0
        %2208 = vmatprep.subr.bf16.mxu0 0
        %2209 = vmatpush2.bf16.msra.mxu0 0
        %2210 = vmatprep.subr.bf16.mxu0 0
        %2211 = vmatpush2.bf16.msra.mxu0 0
        %2212 = vmatprep.subr.bf16.mxu0 0
        %2213 = vmatpush2.bf16.msra.mxu0 0
        %2214 = vmatprep.subr.bf16.mxu0 0
        %2215 = vmatpush2.bf16.msra.mxu0 0
        %2216 = vmatprep.subr.bf16.mxu0 0
        %2217 = vmatpush2.bf16.msra.mxu0 0
        %2218 = vmatprep.subr.bf16.mxu0 0
        %2219 = vmatpush2.bf16.msra.mxu0 0
        %2220 = vmatprep.subr.bf16.mxu0 0
        %2221 = vmatpush2.bf16.msra.mxu0 0
        %2222 = vmatprep.mubr.bf16.mxu0 0
        %2223 = vmatmul.mubr.bf16.gmra.mxu0 %v2085
        %v2224 = vpop.f32.mrf.mxu0
        %v2225 = vadd.f32 %v2105, %v2224
        %v2226 = vpop.f32.mrf.mxu0
        %v2227 = vadd.f32 %v2109, %v2226
        %v2228 = vpop.f32.mrf.mxu0
        %v2229 = vadd.f32 %v2105, %v2228
        %v2230 = vpop.f32.mrf.mxu0
        %v2231 = vadd.f32 %v2109, %v2230
        %2232 = vdwg.mxu0
        %v2233 = vmul.f32 %v2225, 0.5
        %v2234 = vmul.f32 %v2227, 0.5
        %v2235 = vmul.f32 %v2229, 0.5
        %v2236 = vmul.f32 %v2231, 0.5
        %v2237 = vmul.f32 %v2225, 0.044715
        %v2238 = vmul.f32 %v2227, 0.044715
        %v2239 = vmul.f32 %v2229, 0.044715
        %v2240 = vmul.f32 %v2231, 0.044715
        %v2241 = vmul.f32 %v2237, %v2225
        %v2242 = vmul.f32 %v2238, %v2227
        %v2243 = vmul.f32 %v2239, %v2229
        %v2244 = vmul.f32 %v2240, %v2231
        %v2245 = vmul.f32 %v2241, %v2225
        %v2246 = vmul.f32 %v2242, %v2227
        %v2247 = vmul.f32 %v2243, %v2229
        %v2248 = vmul.f32 %v2244, %v2231
        %v2249 = vadd.f32 %v2225, %v2245
        %v2250 = vadd.f32 %v2227, %v2246
        %v2251 = vadd.f32 %v2229, %v2247
        %v2252 = vadd.f32 %v2231, %v2248
        %v2253 = vmul.f32 %v2249, 0.7978846
        %v2254 = vmul.f32 %v2250, 0.7978846
        %v2255 = vmul.f32 %v2251, 0.7978846
        %v2256 = vmul.f32 %v2252, 0.7978846
        %v2257 = vtanh.pop %v2253
        %v2258 = vtanh.pop %v2254
        %v2259 = vtanh.pop %v2255
        %v2260 = vtanh.pop %v2256
        %v2261 = vadd.f32 %v2257, 1.0
        %v2262 = vadd.f32 %v2258, 1.0
        %v2263 = vadd.f32 %v2259, 1.0
        %v2264 = vadd.f32 %v2260, 1.0
        %v2265 = vmul.f32 %v2233, %v2261
        %v2266 = vmul.f32 %v2234, %v2262
        %v2267 = vmul.f32 %v2235, %v2263
        %v2268 = vmul.f32 %v2236, %v2264
        %v2269 = vpack.c.bf16 %v2267, %v2265
        %v2270 = vpack.c.bf16 %v2268, %v2266
        %v2271 = vld [vmem:[%s601] sm:$0xf]
        %v2272 = vld [vmem:[%s601 + $0x4] sm:$0xf]
        %v2273 = vld [vmem:[%s601 + $0x8] sm:$0xf]
        %v2274 = vld [vmem:[%s601 + $0xc] sm:$0xf]
        %v2275 = vld [vmem:[%s601 + $0x10] sm:$0xf]
        %v2276 = vld [vmem:[%s601 + $0x14] sm:$0xf]
        %v2277 = vld [vmem:[%s601 + $0x18] sm:$0xf]
        %v2278 = vld [vmem:[%s601 + $0x1c] sm:$0xf]
        %v2279 = vld [vmem:[%s601 + $0x20] sm:$0xf]
        %v2280 = vld [vmem:[%s601 + $0x24] sm:$0xf]
        %v2281 = vld [vmem:[%s601 + $0x28] sm:$0xf]
        %v2282 = vld [vmem:[%s601 + $0x2c] sm:$0xf]
        %v2283 = vld [vmem:[%s601 + $0x30] sm:$0xf]
        %v2284 = vld [vmem:[%s601 + $0x34] sm:$0xf]
        %v2285 = vld [vmem:[%s601 + $0x38] sm:$0xf]
        %v2286 = vld [vmem:[%s601 + $0x3c] sm:$0xf]
        %v2287 = vld [vmem:[%s601 + $0x40] sm:$0xf]
        %v2288 = vld [vmem:[%s601 + $0x44] sm:$0xf]
        %v2289 = vld [vmem:[%s601 + $0x48] sm:$0xf]
        %v2290 = vld [vmem:[%s601 + $0x4c] sm:$0xf]
        %v2291 = vld [vmem:[%s601 + $0x50] sm:$0xf]
        %v2292 = vld [vmem:[%s601 + $0x54] sm:$0xf]
        %v2293 = vld [vmem:[%s601 + $0x58] sm:$0xf]
        %v2294 = vld [vmem:[%s601 + $0x5c] sm:$0xf]
        %v2295 = vld [vmem:[%s601 + $0x60] sm:$0xf]
        %v2296 = vld [vmem:[%s601 + $0x64] sm:$0xf]
        %v2297 = vld [vmem:[%s601 + $0x68] sm:$0xf]
        %v2298 = vld [vmem:[%s601 + $0x6c] sm:$0xf]
        %v2299 = vld [vmem:[%s601 + $0x70] sm:$0xf]
        %v2300 = vld [vmem:[%s601 + $0x74] sm:$0xf]
        %v2301 = vld [vmem:[%s601 + $0x78] sm:$0xf]
        %v2302 = vld [vmem:[%s601 + $0x7c] sm:$0xf]
        %v2303 = vlaneseq
        %v2304 = vshrl.u32 %v2303, 7
        %v2305 = vsub.s32 3, %v2304
        %v2306 = vrot.slane %v1221, %v2305
        %v2339 = vunpack.c.l.b16 %v2271
        %v2340 = vunpack.c.l.b16 %v2272
        %v2341 = vunpack.c.l.b16 %v2273
        %v2342 = vunpack.c.l.b16 %v2274
        %v2343 = vunpack.c.l.b16 %v2275
        %v2344 = vunpack.c.l.b16 %v2276
        %v2345 = vunpack.c.l.b16 %v2277
        %v2346 = vunpack.c.l.b16 %v2278
        %v2347 = vunpack.c.l.b16 %v2279
        %v2348 = vunpack.c.l.b16 %v2280
        %v2349 = vunpack.c.l.b16 %v2281
        %v2350 = vunpack.c.l.b16 %v2282
        %v2351 = vunpack.c.l.b16 %v2283
        %v2352 = vunpack.c.l.b16 %v2284
        %v2353 = vunpack.c.l.b16 %v2285
        %v2354 = vunpack.c.l.b16 %v2286
        %v2355 = vunpack.c.l.b16 %v2287
        %v2356 = vunpack.c.l.b16 %v2288
        %v2357 = vunpack.c.l.b16 %v2289
        %v2358 = vunpack.c.l.b16 %v2290
        %v2359 = vunpack.c.l.b16 %v2291
        %v2360 = vunpack.c.l.b16 %v2292
        %v2361 = vunpack.c.l.b16 %v2293
        %v2362 = vunpack.c.l.b16 %v2294
        %v2363 = vunpack.c.l.b16 %v2295
        %v2364 = vunpack.c.l.b16 %v2296
        %v2365 = vunpack.c.l.b16 %v2297
        %v2366 = vunpack.c.l.b16 %v2298
        %v2367 = vunpack.c.l.b16 %v2299
        %v2368 = vunpack.c.l.b16 %v2300
        %v2369 = vunpack.c.l.b16 %v2301
        %v2370 = vunpack.c.l.b16 %v2302
        %v2371 = vpack.c.b16 %v2340, %v2339
        %v2372 = vpack.c.b16 %v2342, %v2341
        %v2373 = vpack.c.b16 %v2344, %v2343
        %v2374 = vpack.c.b16 %v2346, %v2345
        %v2375 = vpack.c.b16 %v2348, %v2347
        %v2376 = vpack.c.b16 %v2350, %v2349
        %v2377 = vpack.c.b16 %v2352, %v2351
        %v2378 = vpack.c.b16 %v2354, %v2353
        %v2379 = vpack.c.b16 %v2356, %v2355
        %v2380 = vpack.c.b16 %v2358, %v2357
        %v2381 = vpack.c.b16 %v2360, %v2359
        %v2382 = vpack.c.b16 %v2362, %v2361
        %v2383 = vpack.c.b16 %v2364, %v2363
        %v2384 = vpack.c.b16 %v2366, %v2365
        %v2385 = vpack.c.b16 %v2368, %v2367
        %v2386 = vpack.c.b16 %v2370, %v2369
        %2403 = vmatprep.subr.bf16.mxu0 0
        %2404 = vmatpush1.bf16.msra.mxu0 %v2378
        %2405 = vmatprep.subr.bf16.mxu0 0
        %2406 = vmatpush1.bf16.msra.mxu0 %v2377
        %2407 = vmatprep.subr.bf16.mxu0 0
        %2408 = vmatpush1.bf16.msra.mxu0 %v2376
        %2409 = vmatprep.subr.bf16.mxu0 0
        %2410 = vmatpush1.bf16.msra.mxu0 %v2375
        %2411 = vmatprep.subr.bf16.mxu0 0
        %2412 = vmatpush1.bf16.msra.mxu0 %v2374
        %2413 = vmatprep.subr.bf16.mxu0 0
        %2414 = vmatpush1.bf16.msra.mxu0 %v2373
        %2415 = vmatprep.subr.bf16.mxu0 0
        %2416 = vmatpush1.bf16.msra.mxu0 %v2372
        %2417 = vmatprep.subr.bf16.mxu0 0
        %2418 = vmatpush1.bf16.msra.mxu0 %v2371
        %2419 = vmatprep.subr.bf16.mxu0 0
        %2420 = vmatpush2.bf16.msra.mxu0 %v2386
        %2421 = vmatprep.subr.bf16.mxu0 0
        %2422 = vmatpush2.bf16.msra.mxu0 %v2385
        %2423 = vmatprep.subr.bf16.mxu0 0
        %2424 = vmatpush2.bf16.msra.mxu0 %v2384
        %2425 = vmatprep.subr.bf16.mxu0 0
        %2426 = vmatpush2.bf16.msra.mxu0 %v2383
        %2427 = vmatprep.subr.bf16.mxu0 0
        %2428 = vmatpush2.bf16.msra.mxu0 %v2382
        %2429 = vmatprep.subr.bf16.mxu0 0
        %2430 = vmatpush2.bf16.msra.mxu0 %v2381
        %2431 = vmatprep.subr.bf16.mxu0 0
        %2432 = vmatpush2.bf16.msra.mxu0 %v2380
        %2433 = vmatprep.subr.bf16.mxu0 0
        %2434 = vmatpush2.bf16.msra.mxu0 %v2379
        %2435 = vmatprep.mubr.bf16.mxu0 %v2270
        %2436 = vmatmul.mubr.bf16.gmra.mxu0 %v2269
        %v2437 = vpop.f32.mrf.mxu0
        %v2438 = vadd.f32 %v2306, %v2437
        %v2439 = vpop.f32.mrf.mxu0
        %v2440 = vpop.f32.mrf.mxu0
        %v2441 = vadd.f32 %v2306, %v2440
        %v2442 = vpop.f32.mrf.mxu0
        %2443 = vdwg.mxu0
        %v2444 = vadd.f32 %v2083, %v2438
        %v2445 = vadd.f32 %v2084, %v2441
        %2446 = vadd.xlane.f32.xlu0 %v2444
        %v2447 = vpop.xlane.xlu0 %2446
        %2448 = vadd.xlane.f32.xlu0 %v2445
        %v2449 = vpop.xlane.xlu0 %2448
        %v2450 = vmul.f32 %v2447, %v2054
        %v2451 = vmul.f32 %v2449, %v2054
        %v2452 = vsub.f32 %v2444, %v2450
        %v2453 = vsub.f32 %v2445, %v2451
        %v2454 = vmul.f32 %v2452, %v2452
        %v2455 = vmul.f32 %v2453, %v2453
        %2456 = vadd.xlane.f32.xlu0 %v2454
        %v2457 = vpop.xlane.xlu0 %2456
        %2458 = vadd.xlane.f32.xlu0 %v2455
        %v2459 = vpop.xlane.xlu0 %2458
        %v2460 = vmul.f32 %v2457, %v2054
        %v2461 = vmul.f32 %v2459, %v2054
        %v2462 = vadd.f32 %v2460, 1e-12
        %v2463 = vadd.f32 %v2461, 1e-12
        %v2464 = vrsqrt.pop %v2462
        %v2465 = vrsqrt.pop %v2463
        %v2466 = vmul.f32 %v2452, %v2464
        %v2467 = vmul.f32 %v2453, %v2465
        %v2468 = vlaneseq
        %v2469 = vshrl.u32 %v2468, 7
        %v2470 = vsub.s32 6, %v2469
        %v2471 = vrot.slane %v1221, %v2470
        %v2472 = vmul.f32 %v2466, %v2471
        %v2473 = vmul.f32 %v2467, %v2471
        %v2474 = vlaneseq
        %v2475 = vshrl.u32 %v2474, 7
        %v2476 = vsub.s32 7, %v2475
        %v2477 = vrot.slane %v1221, %v2476
        %v2478 = vadd.f32 %v2472, %v2477
        %v2479 = vadd.f32 %v2473, %v2477
        %2480 = vst [vmem:[#allocation2] sm:$0xff] %v2478
        %2481 = vst [vmem:[#allocation2 + $0x8] sm:$0xff] %v2479
        %2482 = vst [vmem:[#allocation17] sm:$0xff] %v2478
        %2483 = vst [vmem:[#allocation17 + $0x8] sm:$0xff] %v2479
        // Predicated region
        $region113: #{glyph_model_forward.1} parent=75 // pred_check
          %p2484 = pneg %p369
        $region114: #{glyph_model_forward.1} parent=75 // pred_check_branch
          %2486 = sbr.rel (%p2484) target = $region116
        $region115: #{glyph_model_forward.1} parent=75 // pred_region
          %s2488 = ssub.s32 256, 256
          %2489 = vsyncadd [#allocation5], %s2488
          %s2490 = sshll.u32 [#allocation17], 4
          %s2491 = int_to_ptr.vmem [resolvable:$true] %s2490
          %2496 = dma.vmem_to_hbm [thread:$0]  %s2491, 256, %s14, [#allocation5], 128, 128, 8
        $region116: #{glyph_model_forward.1} parent=75 // pred_fallthru
          _
        // Predicated region
        $region117: #{glyph_model_forward.1} parent=75 // pred_check
          %p2497 = pneg %p369
        $region118: #{glyph_model_forward.1} parent=75 // pred_check_branch
          %2499 = sbr.rel (%p2497) target = $region120
        $region119: #{glyph_model_forward.1} parent=75 // pred_region
          %2500 = dma.done [#allocation5], 256
        $region120: #{glyph_model_forward.1} parent=75 // pred_fallthru
          _
      $region76: #{glyph_model_forward.1} parent=5 // pred_fallthru
        _
      %p2501 = scmp.le.s32.totalorder 2, %s32
      // Predicated region
      $region121: #{glyph_model_forward.1} parent=5 // pred_check
        %p2502 = pneg %p2501
      $region122: #{glyph_model_forward.1} parent=5 // pred_check_branch
        %2504 = sbr.rel (%p2502) target = $region124
      $region123: #{glyph_model_forward.1} parent=5 // pred_region
        %s2505 = ssub.s32 %s32, 2
      $region124: #{glyph_model_forward.1} parent=5 // pred_fallthru
        _
    $region6: #{glyph_model_forward.1} parent=1 // loop_footer
      %s36 = sadd.s32 1, %s32
    $region7: #{glyph_model_forward.1} parent=1 // loop_footer_branch
      %31 = sbr.rel target = $region3
    $region8: #{glyph_model_forward.1} parent=1 // loop_exit
      _
    %2506 = vsyncpa [#allocation4], 1
    %s2507 = scalar_lea.sflag [#allocation4], 1
    %2508 = vsyncpa %s2507, 1
    %2509 = vsyncpa [#allocation7], 1
    %2510 = vsyncpa [#allocation10], 1
    %s2511 = scalar_lea.sflag [#allocation10], 1
    %2512 = vsyncpa %s2511, 1
    %2513 = vsyncpa [#allocation13], 1
    %s2514 = scalar_lea.sflag [#allocation13], 1
    %2515 = vsyncpa %s2514, 1
    %2516 = vsyncpa [#allocation16], 1
    %s2517 = scalar_lea.sflag [#allocation16], 1
    %2518 = vsyncpa %s2517, 1
    %2519 = vsyncpa [#allocation5], 1
    %s2520 = scalar_lea.sflag [#allocation5], 1
    %2521 = vsyncpa %s2520, 1

</llo_original>
